<compile_context>
chip_gen: v7x
topology: tpu7x:2x2x1
jax: 0.10.0
libtpu: 0.0.40
codegen_flags: <defaults>
</compile_context>

<pallas_src>
import math

import jax
import jax.numpy as jnp
from jax.experimental import pallas as pl
from jax.experimental.pallas import tpu as pltpu

LANE = 128      # TPU lane width: feature dims are padded to a multiple of this.
ROW_TILE = 64   # Â rows per grid step   (multiple of 8, sublane-aligned)
COL_TILE = 128  # Â columns per grid step (multiple of 128, lane-aligned)


def _round_up(x, m):
    return ((x + m - 1) // m) * m


def arma_kernel(adj_ref, x_ref, wts_ref, vt_ref, bias_ref, out_ref,
                feats_ref, part_ref, skip_ref):
    """Grid = (T, num_row_tiles, num_col_tiles).

    adj_ref : [TR, TC]       bf16  tile (i, j) of Â (streamed from HBM)
    x_ref   : [NP, DP]       f32   padded node features (VMEM resident)
    wts_ref : [K*T, DP, DP]  f32   row k*T+t = W0_kᵀ (t==0) or W_kᵀ, padded
    vt_ref  : [K, DP, DP]    f32   V_kᵀ, padded
    bias_ref: [K*T, 1, DP]   f32   bias[k, t], padded
    out_ref : [NP, DP]       f32   sum_k H_T^(k) / K (single resident block)

    feats_ref: [2, K, NP, DP] f32  H_t double buffer (slot = t % 2) per stack
    part_ref : [K, TR, DP]    f32  per-stack partial of Â @ H_t over column tiles
    skip_ref : [K, NP, DP]    f32  hoisted skip terms 2 · X · V_kᵀ
    """
    t = pl.program_id(0)
    i = pl.program_id(1)
    j = pl.program_id(2)
    n_col = pl.num_programs(2)

    K = vt_ref.shape[0]
    T = wts_ref.shape[0] // K
    TR, TC = adj_ref.shape

    rslot = t % 2            # slot holding H_t
    wslot = (t + 1) % 2      # slot receiving H_{t+1}

    # ---- one-time init: H_0 = X for every stack; hoist skip_k = 2·X·V_kᵀ ----
    @pl.when((t == 0) & (i == 0) & (j == 0))
    def _init():
        x = x_ref[...]
        for k in range(K):
            feats_ref[0, k] = x
            skip_ref[k] = 2.0 * jnp.dot(x, vt_ref[k],
                                        preferred_element_type=jnp.float32)

    # ---- accumulate Â[i, j] @ H_t[j-chunk] into the per-stack partials -------
    a_tile = adj_ref[...]                                   # bf16 [TR, TC]
    col0 = pl.multiple_of(j * TC, TC)
    for k in range(K):
        h_chunk = feats_ref[rslot, k, pl.ds(col0, TC), :]   # f32 [TC, DP]
        contrib = jnp.dot(a_tile, h_chunk.astype(jnp.bfloat16),
                          preferred_element_type=jnp.float32)

        @pl.when(j == 0)
        def _():
            part_ref[k] = contrib

        @pl.when(j != 0)
        def _():
            part_ref[k] = part_ref[k] + contrib

    # ---- last column tile: apply W, skip, bias; stage next H / emit output ---
    @pl.when(j == n_col - 1)
    def _finalize():
        row0 = pl.multiple_of(i * TR, TR)
        total = None
        for k in range(K):
            w_kt = wts_ref[k * T + t]                        # [DP, DP] (pre-transposed)
            h = jnp.dot(part_ref[k], w_kt, preferred_element_type=jnp.float32)
            h = h + skip_ref[k, pl.ds(row0, TR), :]
            h = h + bias_ref[k * T + t]                      # [1, DP] broadcast
            total = h if total is None else total + h

            @pl.when(t != T - 1)
            def _stage():
                feats_ref[wslot, k, pl.ds(row0, TR), :] = h

        @pl.when(t == T - 1)
        def _emit():
            out_ref[pl.ds(row0, TR), :] = (total * (1.0 / K)).astype(out_ref.dtype)


def arma_forward(adj, feats, norm, w0, w, v, bias,
                 *, row_tile=ROW_TILE, col_tile=COL_TILE):
    N, in_dim = feats.shape
    K, out_dim, _ = w0.shape
    T = bias.shape[1]
    f32 = jnp.float32

    DP = _round_up(max(in_dim, out_dim), LANE)         # lane-dense feature width
    NP = _round_up(N, math.lcm(row_tile, col_tile))    # node dim padded to tiles
    n_row = NP // row_tile
    n_col = NP // col_tile

    # Symmetrically normalized adjacency Â = D^-1/2 A D^-1/2 (hoists the two
    # `* norm` passes out of the K*T loop), zero-padded and stored in bf16:
    # halves HBM traffic / VMEM footprint of the dominant operand; the Â @ H
    # contraction then runs on the bf16 MXU path with f32 accumulation.
    adj_n = (adj.astype(f32) * norm) * norm.T
    adj_p = jnp.zeros((NP, NP), f32).at[:N, :N].set(adj_n).astype(jnp.bfloat16)

    # Lane-padded node features.
    x_p = jnp.zeros((NP, DP), f32).at[:N, :in_dim].set(feats.astype(f32))

    # Pre-transposed (applied as H @ W) and padded weights, stacked so that
    # row k*T + t holds W0_kᵀ for t == 0 and W_kᵀ otherwise.
    wts = jnp.zeros((K * T, DP, DP), f32)
    vt = jnp.zeros((K, DP, DP), f32)
    for k in range(K):
        vt = vt.at[k, :in_dim, :out_dim].set(v[k].T)
        for t in range(T):
            if t == 0:
                wts = wts.at[k * T + t, :in_dim, :out_dim].set(w0[k].T)
            else:
                wts = wts.at[k * T + t, :out_dim, :out_dim].set(w[k].T)

    bias_p = jnp.zeros((K * T, 1, DP), f32).at[:, 0, :out_dim].set(
        bias.reshape(K * T, out_dim).astype(f32))

    out_p = pl.pallas_call(
        arma_kernel,
        out_shape=jax.ShapeDtypeStruct((NP, DP), f32),
        grid_spec=pltpu.PrefetchScalarGridSpec(
            num_scalar_prefetch=0,
            grid=(T, n_row, n_col),
            in_specs=[
                # Â tiles: the only HBM-streamed operand (pipeline double-buffers it).
                pl.BlockSpec((row_tile, col_tile), lambda t, i, j: (i, j)),
                # Everything below maps to a constant block -> VMEM resident.
                pl.BlockSpec((NP, DP), lambda t, i, j: (0, 0)),
                pl.BlockSpec((K * T, DP, DP), lambda t, i, j: (0, 0, 0)),
                pl.BlockSpec((K, DP, DP), lambda t, i, j: (0, 0, 0)),
                pl.BlockSpec((K * T, 1, DP), lambda t, i, j: (0, 0, 0)),
            ],
            out_specs=pl.BlockSpec((NP, DP), lambda t, i, j: (0, 0)),
            scratch_shapes=[
                pltpu.VMEM((2, K, NP, DP), f32),      # H_t double buffer per stack
                pltpu.VMEM((K, row_tile, DP), f32),   # column-reduction partials
                pltpu.VMEM((K, NP, DP), f32),         # hoisted skip terms 2·X·V_kᵀ
            ],
        ),
        compiler_params=pltpu.CompilerParams(
            # t is a sequential recurrence; step-t+1 row tiles read per-core
            # scratch written by *all* step-t row tiles, so the row axis cannot
            # be megacore-parallel; the column axis is the Â@H reduction (last).
            dimension_semantics=("arbitrary", "arbitrary", "arbitrary"),
            vmem_limit_bytes=48 * 1024 * 1024,
        ),
    )(adj_p, x_p, wts, vt, bias_p)

    return out_p[:N, :out_dim]


def arma_reference(adj, feats, norm, w0, w, v, bias):
    """Plain-JAX f32 reference mirroring the PyTorch forward."""
    K, T = w0.shape[0], bias.shape[1]
    init = feats
    output = None
    for k in range(K):
        f = init
        for t in range(T):
            f = f * norm
            f = adj @ f
            f = f * norm
            f = f @ (w0[k].T if t == 0 else w[k].T)
            f = f + 2.0 * (init @ v[k].T)
            f = f + bias[k, t][None, :]
        output = f if output is None else output + f
    return output / K


def glorot_uniform(key, shape):
    fan_out, fan_in = shape[-2], shape[-1]
    stdv = math.sqrt(6.0 / (fan_in + fan_out))
    return jax.random.uniform(key, shape, jnp.float32, minval=-stdv, maxval=stdv)


if __name__ == "__main__":
    # Small deterministic problem: 200 nodes (pads to 256 -> 4 row tiles x 2 col
    # tiles, exercising streaming + the column reduction), in_dim=8, out_dim=32,
    # K=2 stacks, T=2 layers.
    N, IN_DIM, OUT_DIM, K, T = 200, 8, 32, 2, 2

    key = jax.random.PRNGKey(0)
    k_adj, k_x, k_w0, k_w, k_v = jax.random.split(key, 5)

    # Random directed graph: A[v, u] = 1 for edge u -> v.
    adj = jax.random.bernoulli(k_adj, 0.1, (N, N)).astype(jnp.float32)

    # Node features.
    feats = jax.random.normal(k_x, (N, IN_DIM), jnp.float32)

    # norm = in_degrees.clamp(min=1) ** -0.5, shape [N, 1].
    in_degs = jnp.maximum(adj.sum(axis=1), 1.0)
    norm = (in_degs ** -0.5)[:, None].astype(jnp.float32)

    # Parameters (glorot weights, zero bias), deterministic.
    w0 = glorot_uniform(k_w0, (K, OUT_DIM, IN_DIM))
    w = glorot_uniform(k_w, (K, OUT_DIM, OUT_DIM))
    v = glorot_uniform(k_v, (K, OUT_DIM, IN_DIM))
    bias = jnp.zeros((K, T, OUT_DIM), jnp.float32)

    out = jax.jit(arma_forward)(adj, feats, norm, w0, w, v, bias)
    out = jax.block_until_ready(out)

    ref = arma_reference(adj, feats, norm, w0, w, v, bias)
    assert out.shape == (N, OUT_DIM)
    # Tolerance budget: the Â @ H contraction uses bf16 operands with f32
    # accumulation (per perf review); measured error vs the f32 reference is
    # ~1e-3, so 2e-2 leaves a wide margin while everything else stays f32-exact.
    err = float(jnp.max(jnp.abs(out - ref)))
    assert jnp.allclose(out, ref, atol=2e-2, rtol=2e-2), err

    print("KERNEL_OK")
</pallas_src>

<mosaic_0001>
module attributes {stable_mosaic.version = 11 : i64} {
  func.func @arma_kernel(%arg0: i32, %arg1: i32, %arg2: i32, %arg3: memref<64x128xbf16, #tpu.memory_space<vmem>>, %arg4: memref<256x128xf32, #tpu.memory_space<vmem>>, %arg5: memref<4x128x128xf32, #tpu.memory_space<vmem>>, %arg6: memref<2x128x128xf32, #tpu.memory_space<vmem>>, %arg7: memref<4x1x128xf32, #tpu.memory_space<vmem>>, %arg8: memref<256x128xf32, #tpu.memory_space<vmem>>, %arg9: memref<2x2x256x128xf32, #tpu.memory_space<vmem>>, %arg10: memref<2x64x128xf32, #tpu.memory_space<vmem>>, %arg11: memref<2x256x128xf32, #tpu.memory_space<vmem>>) attributes {dimension_semantics = [#tpu.dimension_semantics<arbitrary>, #tpu.dimension_semantics<arbitrary>, #tpu.dimension_semantics<arbitrary>], iteration_bounds = array<i64: 2, 4, 2>, scalar_prefetch = 0 : i64, scratch_operands = 3 : i64, tpu.core_type = #tpu.core_type<tc>, window_params = [{transform_indices = @transform_0, window_bounds = array<i64: 64, 128>}, {pipeline_mode = #tpu.pipeline_mode<synchronous>, transform_indices = @transform_1, window_bounds = array<i64: 256, 128>}, {pipeline_mode = #tpu.pipeline_mode<synchronous>, transform_indices = @transform_2, window_bounds = array<i64: 4, 128, 128>}, {pipeline_mode = #tpu.pipeline_mode<synchronous>, transform_indices = @transform_3, window_bounds = array<i64: 2, 128, 128>}, {pipeline_mode = #tpu.pipeline_mode<synchronous>, transform_indices = @transform_4, window_bounds = array<i64: 4, 1, 128>}, {pipeline_mode = #tpu.pipeline_mode<synchronous>, transform_indices = @transform_5, window_bounds = array<i64: 256, 128>}]} {
    %c2_i32 = arith.constant 2 : i32
    %c0_i32 = arith.constant 0 : i32
    %0 = arith.cmpi eq, %c2_i32, %c0_i32 : i32
    %c1_i32 = arith.constant 1 : i32
    %1 = arith.select %0, %c1_i32, %c2_i32 : i32
    %2 = arith.remsi %arg0, %1 : i32
    %c0_i32_0 = arith.constant 0 : i32
    %3 = arith.cmpi ne, %2, %c0_i32_0 : i32
    %c0_i32_1 = arith.constant 0 : i32
    %4 = arith.cmpi slt, %2, %c0_i32_1 : i32
    %c0_i32_2 = arith.constant 0 : i32
    %5 = arith.cmpi slt, %1, %c0_i32_2 : i32
    %6 = arith.xori %4, %5 : i1
    %7 = arith.andi %6, %3 : i1
    %8 = arith.addi %2, %1 : i32
    %9 = arith.select %7, %8, %2 : i32
    %c1_i32_3 = arith.constant 1 : i32
    %10 = arith.addi %arg0, %c1_i32_3 : i32
    %c2_i32_4 = arith.constant 2 : i32
    %c0_i32_5 = arith.constant 0 : i32
    %11 = arith.cmpi eq, %c2_i32_4, %c0_i32_5 : i32
    %c1_i32_6 = arith.constant 1 : i32
    %12 = arith.select %11, %c1_i32_6, %c2_i32_4 : i32
    %13 = arith.remsi %10, %12 : i32
    %c0_i32_7 = arith.constant 0 : i32
    %14 = arith.cmpi ne, %13, %c0_i32_7 : i32
    %c0_i32_8 = arith.constant 0 : i32
    %15 = arith.cmpi slt, %13, %c0_i32_8 : i32
    %c0_i32_9 = arith.constant 0 : i32
    %16 = arith.cmpi slt, %12, %c0_i32_9 : i32
    %17 = arith.xori %15, %16 : i1
    %18 = arith.andi %17, %14 : i1
    %19 = arith.addi %13, %12 : i32
    %20 = arith.select %18, %19, %13 : i32
    %c0_i32_10 = arith.constant 0 : i32
    %21 = arith.cmpi eq, %arg0, %c0_i32_10 : i32
    %c0_i32_11 = arith.constant 0 : i32
    %22 = arith.cmpi eq, %arg1, %c0_i32_11 : i32
    %23 = arith.andi %21, %22 : i1
    %c0_i32_12 = arith.constant 0 : i32
    %24 = arith.cmpi eq, %arg2, %c0_i32_12 : i32
    %25 = arith.andi %23, %24 : i1
    %26 = arith.extui %25 : i1 to i32
    %c0_i32_13 = arith.constant 0 : i32
    %27 = arith.cmpi ne, %26, %c0_i32_13 : i32
    scf.if %27 {
      %c0_29 = arith.constant 0 : index
      %c0_30 = arith.constant 0 : index
      %58 = vector.load %arg4[%c0_29, %c0_30] : memref<256x128xf32, #tpu.memory_space<vmem>>, vector<256x128xf32>
      %c0_31 = arith.constant 0 : index
      %c0_32 = arith.constant 0 : index
      %c0_33 = arith.constant 0 : index
      %c0_34 = arith.constant 0 : index
      %59 = vector.load %arg9[%c0_31, %c0_32, %c0_33, %c0_34] : memref<2x2x256x128xf32, #tpu.memory_space<vmem>>, vector<1x1x256x128xf32>
      %60 = vector.shape_cast %59 : vector<1x1x256x128xf32> to vector<256x128xf32>
      %61 = vector.shape_cast %58 : vector<256x128xf32> to vector<1x1x256x128xf32>
      tpu.vector_store %arg9[%c0_31, %c0_32, %c0_33, %c0_34], %61 {strides = array<i32>} : memref<2x2x256x128xf32, #tpu.memory_space<vmem>>, vector<1x1x256x128xf32>,
      %c0_35 = arith.constant 0 : index
      %c0_36 = arith.constant 0 : index
      %c0_37 = arith.constant 0 : index
      %62 = vector.load %arg6[%c0_35, %c0_36, %c0_37] : memref<2x128x128xf32, #tpu.memory_space<vmem>>, vector<1x128x128xf32>
      %63 = vector.shape_cast %62 : vector<1x128x128xf32> to vector<128x128xf32>
      %cst_38 = arith.constant dense<0.000000e+00> : vector<256x128xf32>
      %64 = tpu.matmul %58, %63, %cst_38 {dimension_numbers = #tpu.dot_dimension_numbers<[1], [0], [0], [1], [0, 0, 1, 1], [], []>} : vector<256x128xf32>, vector<128x128xf32>, vector<256x128xf32> -> vector<256x128xf32>
      %cst_39 = arith.constant 2.000000e+00 : f32
      %65 = vector.broadcast %cst_39 : f32 to vector<256x128xf32>
      %66 = arith.mulf %65, %64 : vector<256x128xf32>
      %c0_40 = arith.constant 0 : index
      %c0_41 = arith.constant 0 : index
      %c0_42 = arith.constant 0 : index
      %67 = vector.load %arg11[%c0_40, %c0_41, %c0_42] : memref<2x256x128xf32, #tpu.memory_space<vmem>>, vector<1x256x128xf32>
      %68 = vector.shape_cast %67 : vector<1x256x128xf32> to vector<256x128xf32>
      %69 = vector.shape_cast %66 : vector<256x128xf32> to vector<1x256x128xf32>
      tpu.vector_store %arg11[%c0_40, %c0_41, %c0_42], %69 {strides = array<i32>} : memref<2x256x128xf32, #tpu.memory_space<vmem>>, vector<1x256x128xf32>,
      %c0_43 = arith.constant 0 : index
      %c1_44 = arith.constant 1 : index
      %c0_45 = arith.constant 0 : index
      %c0_46 = arith.constant 0 : index
      %70 = vector.load %arg9[%c0_43, %c1_44, %c0_45, %c0_46] : memref<2x2x256x128xf32, #tpu.memory_space<vmem>>, vector<1x1x256x128xf32>
      %71 = vector.shape_cast %70 : vector<1x1x256x128xf32> to vector<256x128xf32>
      %72 = vector.shape_cast %58 : vector<256x128xf32> to vector<1x1x256x128xf32>
      tpu.vector_store %arg9[%c0_43, %c1_44, %c0_45, %c0_46], %72 {strides = array<i32>} : memref<2x2x256x128xf32, #tpu.memory_space<vmem>>, vector<1x1x256x128xf32>,
      %c1_47 = arith.constant 1 : index
      %c0_48 = arith.constant 0 : index
      %c0_49 = arith.constant 0 : index
      %73 = vector.load %arg6[%c1_47, %c0_48, %c0_49] : memref<2x128x128xf32, #tpu.memory_space<vmem>>, vector<1x128x128xf32>
      %74 = vector.shape_cast %73 : vector<1x128x128xf32> to vector<128x128xf32>
      %cst_50 = arith.constant dense<0.000000e+00> : vector<256x128xf32>
      %75 = tpu.matmul %58, %74, %cst_50 {dimension_numbers = #tpu.dot_dimension_numbers<[1], [0], [0], [1], [0, 0, 1, 1], [], []>} : vector<256x128xf32>, vector<128x128xf32>, vector<256x128xf32> -> vector<256x128xf32>
      %cst_51 = arith.constant 2.000000e+00 : f32
      %76 = vector.broadcast %cst_51 : f32 to vector<256x128xf32>
      %77 = arith.mulf %76, %75 : vector<256x128xf32>
      %c1_52 = arith.constant 1 : index
      %c0_53 = arith.constant 0 : index
      %c0_54 = arith.constant 0 : index
      %78 = vector.load %arg11[%c1_52, %c0_53, %c0_54] : memref<2x256x128xf32, #tpu.memory_space<vmem>>, vector<1x256x128xf32>
      %79 = vector.shape_cast %78 : vector<1x256x128xf32> to vector<256x128xf32>
      %80 = vector.shape_cast %77 : vector<256x128xf32> to vector<1x256x128xf32>
      tpu.vector_store %arg11[%c1_52, %c0_53, %c0_54], %80 {strides = array<i32>} : memref<2x256x128xf32, #tpu.memory_space<vmem>>, vector<1x256x128xf32>,
    } else {
    }
    %c0 = arith.constant 0 : index
    %c0_14 = arith.constant 0 : index
    %28 = vector.load %arg3[%c0, %c0_14] : memref<64x128xbf16, #tpu.memory_space<vmem>>, vector<64x128xbf16>
    %c128_i32 = arith.constant 128 : i32
    %29 = arith.muli %arg2, %c128_i32 : i32
    %30 = tpu.assume_multiple %29, 128 : i32
    %31 = arith.index_cast %9 : i32 to index
    %c0_15 = arith.constant 0 : index
    %32 = arith.index_cast %30 : i32 to index
    %c0_16 = arith.constant 0 : index
    %33 = vector.load %arg9[%31, %c0_15, %32, %c0_16] : memref<2x2x256x128xf32, #tpu.memory_space<vmem>>, vector<1x1x128x128xf32>
    %34 = vector.shape_cast %33 : vector<1x1x128x128xf32> to vector<128x128xf32>
    %35 = arith.truncf %34 : vector<128x128xf32> to vector<128x128xbf16>
    %cst = arith.constant dense<0.000000e+00> : vector<64x128xf32>
    %36 = tpu.matmul %28, %35, %cst {dimension_numbers = #tpu.dot_dimension_numbers<[1], [0], [0], [1], [0, 0, 1, 1], [], []>} : vector<64x128xbf16>, vector<128x128xbf16>, vector<64x128xf32> -> vector<64x128xf32>
    %c0_i32_17 = arith.constant 0 : i32
    %37 = arith.cmpi eq, %arg2, %c0_i32_17 : i32
    %38 = arith.extui %37 : i1 to i32
    %c0_i32_18 = arith.constant 0 : i32
    %39 = arith.cmpi ne, %38, %c0_i32_18 : i32
    scf.if %39 {
      %c0_29 = arith.constant 0 : index
      %c0_30 = arith.constant 0 : index
      %c0_31 = arith.constant 0 : index
      %58 = vector.load %arg10[%c0_29, %c0_30, %c0_31] : memref<2x64x128xf32, #tpu.memory_space<vmem>>, vector<1x64x128xf32>
      %59 = vector.shape_cast %58 : vector<1x64x128xf32> to vector<64x128xf32>
      %60 = vector.shape_cast %36 : vector<64x128xf32> to vector<1x64x128xf32>
      tpu.vector_store %arg10[%c0_29, %c0_30, %c0_31], %60 {strides = array<i32>} : memref<2x64x128xf32, #tpu.memory_space<vmem>>, vector<1x64x128xf32>,
    } else {
    }
    %c0_i32_19 = arith.constant 0 : i32
    %40 = arith.cmpi ne, %arg2, %c0_i32_19 : i32
    %41 = arith.extui %40 : i1 to i32
    %c0_i32_20 = arith.constant 0 : i32
    %42 = arith.cmpi ne, %41, %c0_i32_20 : i32
    scf.if %42 {
      %c0_29 = arith.constant 0 : index
      %c0_30 = arith.constant 0 : index
      %c0_31 = arith.constant 0 : index
      %58 = vector.load %arg10[%c0_29, %c0_30, %c0_31] : memref<2x64x128xf32, #tpu.memory_space<vmem>>, vector<1x64x128xf32>
      %59 = vector.shape_cast %58 : vector<1x64x128xf32> to vector<64x128xf32>
      %60 = arith.addf %59, %36 : vector<64x128xf32>
      %c0_32 = arith.constant 0 : index
      %c0_33 = arith.constant 0 : index
      %c0_34 = arith.constant 0 : index
      %61 = vector.load %arg10[%c0_32, %c0_33, %c0_34] : memref<2x64x128xf32, #tpu.memory_space<vmem>>, vector<1x64x128xf32>
      %62 = vector.shape_cast %61 : vector<1x64x128xf32> to vector<64x128xf32>
      %63 = vector.shape_cast %60 : vector<64x128xf32> to vector<1x64x128xf32>
      tpu.vector_store %arg10[%c0_32, %c0_33, %c0_34], %63 {strides = array<i32>} : memref<2x64x128xf32, #tpu.memory_space<vmem>>, vector<1x64x128xf32>,
    } else {
    }
    %43 = arith.index_cast %9 : i32 to index
    %c1 = arith.constant 1 : index
    %44 = arith.index_cast %30 : i32 to index
    %c0_21 = arith.constant 0 : index
    %45 = vector.load %arg9[%43, %c1, %44, %c0_21] : memref<2x2x256x128xf32, #tpu.memory_space<vmem>>, vector<1x1x128x128xf32>
    %46 = vector.shape_cast %45 : vector<1x1x128x128xf32> to vector<128x128xf32>
    %47 = arith.truncf %46 : vector<128x128xf32> to vector<128x128xbf16>
    %cst_22 = arith.constant dense<0.000000e+00> : vector<64x128xf32>
    %48 = tpu.matmul %28, %47, %cst_22 {dimension_numbers = #tpu.dot_dimension_numbers<[1], [0], [0], [1], [0, 0, 1, 1], [], []>} : vector<64x128xbf16>, vector<128x128xbf16>, vector<64x128xf32> -> vector<64x128xf32>
    %c0_i32_23 = arith.constant 0 : i32
    %49 = arith.cmpi eq, %arg2, %c0_i32_23 : i32
    %50 = arith.extui %49 : i1 to i32
    %c0_i32_24 = arith.constant 0 : i32
    %51 = arith.cmpi ne, %50, %c0_i32_24 : i32
    scf.if %51 {
      %c1_29 = arith.constant 1 : index
      %c0_30 = arith.constant 0 : index
      %c0_31 = arith.constant 0 : index
      %58 = vector.load %arg10[%c1_29, %c0_30, %c0_31] : memref<2x64x128xf32, #tpu.memory_space<vmem>>, vector<1x64x128xf32>
      %59 = vector.shape_cast %58 : vector<1x64x128xf32> to vector<64x128xf32>
      %60 = vector.shape_cast %48 : vector<64x128xf32> to vector<1x64x128xf32>
      tpu.vector_store %arg10[%c1_29, %c0_30, %c0_31], %60 {strides = array<i32>} : memref<2x64x128xf32, #tpu.memory_space<vmem>>, vector<1x64x128xf32>,
    } else {
    }
    %c0_i32_25 = arith.constant 0 : i32
    %52 = arith.cmpi ne, %arg2, %c0_i32_25 : i32
    %53 = arith.extui %52 : i1 to i32
    %c0_i32_26 = arith.constant 0 : i32
    %54 = arith.cmpi ne, %53, %c0_i32_26 : i32
    scf.if %54 {
      %c1_29 = arith.constant 1 : index
      %c0_30 = arith.constant 0 : index
      %c0_31 = arith.constant 0 : index
      %58 = vector.load %arg10[%c1_29, %c0_30, %c0_31] : memref<2x64x128xf32, #tpu.memory_space<vmem>>, vector<1x64x128xf32>
      %59 = vector.shape_cast %58 : vector<1x64x128xf32> to vector<64x128xf32>
      %60 = arith.addf %59, %48 : vector<64x128xf32>
      %c1_32 = arith.constant 1 : index
      %c0_33 = arith.constant 0 : index
      %c0_34 = arith.constant 0 : index
      %61 = vector.load %arg10[%c1_32, %c0_33, %c0_34] : memref<2x64x128xf32, #tpu.memory_space<vmem>>, vector<1x64x128xf32>
      %62 = vector.shape_cast %61 : vector<1x64x128xf32> to vector<64x128xf32>
      %63 = vector.shape_cast %60 : vector<64x128xf32> to vector<1x64x128xf32>
      tpu.vector_store %arg10[%c1_32, %c0_33, %c0_34], %63 {strides = array<i32>} : memref<2x64x128xf32, #tpu.memory_space<vmem>>, vector<1x64x128xf32>,
    } else {
    }
    %c1_i32_27 = arith.constant 1 : i32
    %55 = arith.cmpi eq, %arg2, %c1_i32_27 : i32
    %56 = arith.extui %55 : i1 to i32
    %c0_i32_28 = arith.constant 0 : i32
    %57 = arith.cmpi ne, %56, %c0_i32_28 : i32
    scf.if %57 {
      %c64_i32 = arith.constant 64 : i32
      %58 = arith.muli %arg1, %c64_i32 : i32
      %59 = tpu.assume_multiple %58, 64 : i32
      %c0_i32_29 = arith.constant 0 : i32
      %60 = arith.addi %c0_i32_29, %arg0 : i32
      %61 = arith.index_cast %60 : i32 to index
      %c0_30 = arith.constant 0 : index
      %c0_31 = arith.constant 0 : index
      %62 = vector.load %arg5[%61, %c0_30, %c0_31] : memref<4x128x128xf32, #tpu.memory_space<vmem>>, vector<1x128x128xf32>
      %63 = vector.shape_cast %62 : vector<1x128x128xf32> to vector<128x128xf32>
      %c0_32 = arith.constant 0 : index
      %c0_33 = arith.constant 0 : index
      %c0_34 = arith.constant 0 : index
      %64 = vector.load %arg10[%c0_32, %c0_33, %c0_34] : memref<2x64x128xf32, #tpu.memory_space<vmem>>, vector<1x64x128xf32>
      %65 = vector.shape_cast %64 : vector<1x64x128xf32> to vector<64x128xf32>
      %cst_35 = arith.constant dense<0.000000e+00> : vector<64x128xf32>
      %66 = tpu.matmul %65, %63, %cst_35 {dimension_numbers = #tpu.dot_dimension_numbers<[1], [0], [0], [1], [0, 0, 1, 1], [], []>} : vector<64x128xf32>, vector<128x128xf32>, vector<64x128xf32> -> vector<64x128xf32>
      %c0_36 = arith.constant 0 : index
      %67 = arith.index_cast %59 : i32 to index
      %c0_37 = arith.constant 0 : index
      %68 = vector.load %arg11[%c0_36, %67, %c0_37] : memref<2x256x128xf32, #tpu.memory_space<vmem>>, vector<1x64x128xf32>
      %69 = vector.shape_cast %68 : vector<1x64x128xf32> to vector<64x128xf32>
      %70 = arith.addf %66, %69 : vector<64x128xf32>
      %c0_i32_38 = arith.constant 0 : i32
      %71 = arith.addi %c0_i32_38, %arg0 : i32
      %72 = arith.index_cast %71 : i32 to index
      %c0_39 = arith.constant 0 : index
      %c0_40 = arith.constant 0 : index
      %73 = vector.load %arg7[%72, %c0_39, %c0_40] : memref<4x1x128xf32, #tpu.memory_space<vmem>>, vector<1x1x128xf32>
      %74 = vector.shape_cast %73 : vector<1x1x128xf32> to vector<1x128xf32>
      %75 = vector.broadcast %74 : vector<1x128xf32> to vector<64x128xf32>
      %76 = arith.addf %70, %75 : vector<64x128xf32>
      %c1_i32_41 = arith.constant 1 : i32
      %77 = arith.cmpi ne, %arg0, %c1_i32_41 : i32
      %78 = arith.extui %77 : i1 to i32
      %c0_i32_42 = arith.constant 0 : i32
      %79 = arith.cmpi ne, %78, %c0_i32_42 : i32
      scf.if %79 {
        %104 = arith.index_cast %20 : i32 to index
        %c0_59 = arith.constant 0 : index
        %105 = arith.index_cast %59 : i32 to index
        %c0_60 = arith.constant 0 : index
        %106 = vector.load %arg9[%104, %c0_59, %105, %c0_60] : memref<2x2x256x128xf32, #tpu.memory_space<vmem>>, vector<1x1x64x128xf32>
        %107 = vector.shape_cast %106 : vector<1x1x64x128xf32> to vector<64x128xf32>
        %108 = vector.shape_cast %76 : vector<64x128xf32> to vector<1x1x64x128xf32>
        tpu.vector_store %arg9[%104, %c0_59, %105, %c0_60], %108 {strides = array<i32>} : memref<2x2x256x128xf32, #tpu.memory_space<vmem>>, vector<1x1x64x128xf32>,
      } else {
      }
      %c2_i32_43 = arith.constant 2 : i32
      %80 = arith.addi %c2_i32_43, %arg0 : i32
      %81 = arith.index_cast %80 : i32 to index
      %c0_44 = arith.constant 0 : index
      %c0_45 = arith.constant 0 : index
      %82 = vector.load %arg5[%81, %c0_44, %c0_45] : memref<4x128x128xf32, #tpu.memory_space<vmem>>, vector<1x128x128xf32>
      %83 = vector.shape_cast %82 : vector<1x128x128xf32> to vector<128x128xf32>
      %c1_46 = arith.constant 1 : index
      %c0_47 = arith.constant 0 : index
      %c0_48 = arith.constant 0 : index
      %84 = vector.load %arg10[%c1_46, %c0_47, %c0_48] : memref<2x64x128xf32, #tpu.memory_space<vmem>>, vector<1x64x128xf32>
      %85 = vector.shape_cast %84 : vector<1x64x128xf32> to vector<64x128xf32>
      %cst_49 = arith.constant dense<0.000000e+00> : vector<64x128xf32>
      %86 = tpu.matmul %85, %83, %cst_49 {dimension_numbers = #tpu.dot_dimension_numbers<[1], [0], [0], [1], [0, 0, 1, 1], [], []>} : vector<64x128xf32>, vector<128x128xf32>, vector<64x128xf32> -> vector<64x128xf32>
      %c1_50 = arith.constant 1 : index
      %87 = arith.index_cast %59 : i32 to index
      %c0_51 = arith.constant 0 : index
      %88 = vector.load %arg11[%c1_50, %87, %c0_51] : memref<2x256x128xf32, #tpu.memory_space<vmem>>, vector<1x64x128xf32>
      %89 = vector.shape_cast %88 : vector<1x64x128xf32> to vector<64x128xf32>
      %90 = arith.addf %86, %89 : vector<64x128xf32>
      %c2_i32_52 = arith.constant 2 : i32
      %91 = arith.addi %c2_i32_52, %arg0 : i32
      %92 = arith.index_cast %91 : i32 to index
      %c0_53 = arith.constant 0 : index
      %c0_54 = arith.constant 0 : index
      %93 = vector.load %arg7[%92, %c0_53, %c0_54] : memref<4x1x128xf32, #tpu.memory_space<vmem>>, vector<1x1x128xf32>
      %94 = vector.shape_cast %93 : vector<1x1x128xf32> to vector<1x128xf32>
      %95 = vector.broadcast %94 : vector<1x128xf32> to vector<64x128xf32>
      %96 = arith.addf %90, %95 : vector<64x128xf32>
      %97 = arith.addf %76, %96 : vector<64x128xf32>
      %c1_i32_55 = arith.constant 1 : i32
      %98 = arith.cmpi ne, %arg0, %c1_i32_55 : i32
      %99 = arith.extui %98 : i1 to i32
      %c0_i32_56 = arith.constant 0 : i32
      %100 = arith.cmpi ne, %99, %c0_i32_56 : i32
      scf.if %100 {
        %104 = arith.index_cast %20 : i32 to index
        %c1_59 = arith.constant 1 : index
        %105 = arith.index_cast %59 : i32 to index
        %c0_60 = arith.constant 0 : index
        %106 = vector.load %arg9[%104, %c1_59, %105, %c0_60] : memref<2x2x256x128xf32, #tpu.memory_space<vmem>>, vector<1x1x64x128xf32>
        %107 = vector.shape_cast %106 : vector<1x1x64x128xf32> to vector<64x128xf32>
        %108 = vector.shape_cast %96 : vector<64x128xf32> to vector<1x1x64x128xf32>
        tpu.vector_store %arg9[%104, %c1_59, %105, %c0_60], %108 {strides = array<i32>} : memref<2x2x256x128xf32, #tpu.memory_space<vmem>>, vector<1x1x64x128xf32>,
      } else {
      }
      %c1_i32_57 = arith.constant 1 : i32
      %101 = arith.cmpi eq, %arg0, %c1_i32_57 : i32
      %102 = arith.extui %101 : i1 to i32
      %c0_i32_58 = arith.constant 0 : i32
      %103 = arith.cmpi ne, %102, %c0_i32_58 : i32
      scf.if %103 {
        %cst_59 = arith.constant 5.000000e-01 : f32
        %104 = vector.broadcast %cst_59 : f32 to vector<64x128xf32>
        %105 = arith.mulf %97, %104 : vector<64x128xf32>
        %106 = arith.index_cast %59 : i32 to index
        %c0_60 = arith.constant 0 : index
        %107 = vector.load %arg8[%106, %c0_60] : memref<256x128xf32, #tpu.memory_space<vmem>>, vector<64x128xf32>
        tpu.vector_store %arg8[%106, %c0_60], %105 {strides = array<i32>} : memref<256x128xf32, #tpu.memory_space<vmem>>, vector<64x128xf32>,
      } else {
      }
    } else {
    }
    return
  }
  func.func @transform_0(%arg0: i32, %arg1: i32, %arg2: i32) -> (i32, i32) {
    %c0_i32 = arith.constant 0 : i32
    return %arg1, %arg2 : i32, i32
  }
  func.func @transform_1(%arg0: i32, %arg1: i32, %arg2: i32) -> (i32, i32) {
    %c0_i32 = arith.constant 0 : i32
    %c0_i32_0 = arith.constant 0 : i32
    %c0_i32_1 = arith.constant 0 : i32
    return %c0_i32, %c0_i32_0 : i32, i32
  }
  func.func @transform_2(%arg0: i32, %arg1: i32, %arg2: i32) -> (i32, i32, i32) {
    %c0_i32 = arith.constant 0 : i32
    %c0_i32_0 = arith.constant 0 : i32
    %c0_i32_1 = arith.constant 0 : i32
    %c0_i32_2 = arith.constant 0 : i32
    return %c0_i32, %c0_i32_0, %c0_i32_1 : i32, i32, i32
  }
  func.func @transform_3(%arg0: i32, %arg1: i32, %arg2: i32) -> (i32, i32, i32) {
    %c0_i32 = arith.constant 0 : i32
    %c0_i32_0 = arith.constant 0 : i32
    %c0_i32_1 = arith.constant 0 : i32
    %c0_i32_2 = arith.constant 0 : i32
    return %c0_i32, %c0_i32_0, %c0_i32_1 : i32, i32, i32
  }
  func.func @transform_4(%arg0: i32, %arg1: i32, %arg2: i32) -> (i32, i32, i32) {
    %c0_i32 = arith.constant 0 : i32
    %c0_i32_0 = arith.constant 0 : i32
    %c0_i32_1 = arith.constant 0 : i32
    %c0_i32_2 = arith.constant 0 : i32
    return %c0_i32, %c0_i32_0, %c0_i32_1 : i32, i32, i32
  }
  func.func @transform_5(%arg0: i32, %arg1: i32, %arg2: i32) -> (i32, i32) {
    %c0_i32 = arith.constant 0 : i32
    %c0_i32_0 = arith.constant 0 : i32
    %c0_i32_1 = arith.constant 0 : i32
    return %c0_i32, %c0_i32_0 : i32, i32
  }
}

</mosaic_0001>

<llo_original>
// kernel: arma_forward.1
$region0: #{arma_forward.1}
  #allocation0 [shape = 'u32[]', space=smem, size = 0x4, offset = 0x4, fixed_abs, tag = 'smem constant byte address 0x4 - core index']
  #allocation1 [shape = 'u32[144,128]{1,0:T(1,128)}', space=vmem, size = 0x12000, scoped, tag = 'internal scratch']
  #allocation2 [shape = 'f32[2,2,256,128]{3,2,1,0:T(8,128)}', space=vmem, size = 0x80000, scoped, tag = 'scratch operand']
  #allocation3 [shape = 'f32[2,64,128]{2,1,0:T(8,128)}', space=vmem, size = 0x10000, scoped, tag = 'scratch operand']
  #allocation4 [shape = 'f32[2,256,128]{2,1,0:T(8,128)}', space=vmem, size = 0x40000, scoped, tag = 'scratch operand']
  %s0 = inlined_call_operand.vmem [shape: bf16[256,256], index: 0, kind: input, shape index: {}]
  %s1 = inlined_call_operand.vmem [shape: f32[256,128], index: 1, kind: input, shape index: {}]
  %s2 = inlined_call_operand.vmem [shape: f32[4,128,128], index: 2, kind: input, shape index: {}]
  %s3 = inlined_call_operand.vmem [shape: f32[2,128,128], index: 3, kind: input, shape index: {}]
  %s4 = inlined_call_operand.vmem [shape: f32[4,1,128], index: 4, kind: input, shape index: {}]
  %s5 = inlined_call_operand.vmem [shape: f32[256,128], index: 5, kind: output, shape index: {}]
  %s6 = sld [smem:[#allocation0]]
  $region130: #{arma_forward.1} parent=0
    _
  %s8 = ssub.s32 1, %s6
  %s9 = scalar_select 0, %s8, %s6
  $region1: #{arma_forward.1} parent=0
    #allocation5 [shape = 'u8[32768]{0}', space=vmem, size = 0x8000, scoped, tag = 'input window, operand 0']
    loop: start=0, step=1, limit=18
    $region2: #{arma_forward.1} parent=1 // loop_pre_header
      _
    $region3: #{arma_forward.1} parent=1 // loop_header
      %s11 = sphi 0, %s15
      %p12 = scmp.ge.s32.totalorder %s11, 18
      %s18 = sphi 0, %s37
      %s19 = sphi 0, %s33
      %s20 = sphi 0, %s29
      %s21 = sphi 0, %s18
      %s22 = sphi 0, %s19
      %s23 = sphi 0, %s20
      %s24 = sphi 0, %s21
      %s25 = sphi 0, %s22
      %s26 = sphi 0, %s23
      %s42 = sphi 0, %s44
      %s45 = sphi 0, %s42
      %s46 = sphi 0, %s45
      %s62 = sphi 0, %s46
      %s66 = sphi 0, %s66
      %s68 = sphi 0, %s66
      %s69 = sphi 0, %s68
      %s83 = sphi 0, %s69
      %s87 = sphi 0, %s87
      %s89 = sphi 0, %s87
      %s90 = sphi 0, %s89
      %s104 = sphi 0, %s90
      %s108 = sphi 0, %s108
      %s110 = sphi 0, %s108
      %s111 = sphi 0, %s110
      %s125 = sphi 0, %s111
      %s129 = sphi 0, %s129
      %s131 = sphi 0, %s129
      %s132 = sphi 0, %s131
      %s146 = sphi 0, %s132
      %s150 = sphi 0, %s150
      %s152 = sphi 0, %s150
      %s153 = sphi 0, %s152
      %s167 = sphi 0, %s153
    $region4: #{arma_forward.1} parent=1 // loop_header_branch
      %14 = sbr.rel (%p12) target = $region8
    $region5: #{arma_forward.1} parent=1 // loop_body
      %s16 = ssub.s32 %s11, 1
      %s17 = ssub.s32 %s11, 2
      %s27 = sadd.s32 1, %s20
      %p28 = scmp.ge.s32.totalorder %s27, 2
      %s29 = scalar_select %p28, 0, %s27
      %s30 = sadd.s32 1, %s19
      %s31 = scalar_select %p28, %s30, %s19
      %p32 = scmp.ge.s32.totalorder %s31, 4
      %s33 = scalar_select %p32, 0, %s31
      %s34 = sadd.s32 1, %s18
      %s35 = scalar_select %p32, %s34, %s18
      %p36 = scmp.ge.s32.totalorder %s35, 2
      %s37 = scalar_select %p36, 0, %s35
      %s38 = ssub.s32 %s19, %s33
      %s39 = ssub.s32 %s20, %s29
      %s40 = sor.u32 %s38, %s39
      %p41 = scmp.eq.s32.totalorder %s40, 0
      %s43 = sadd.s32 %s42, 1
      %s44 = scalar_select %p41, %s42, %s43
      %p47 = pneg %p41
      %p48 = scmp.eq.s32.totalorder %s11, 15
      %p49 = por %p47, %p48
      %p50 = scmp.ne.s32.totalorder %s42, %s45
      %p51 = scmp.eq.s32.totalorder %s11, 0
      %p52 = por %p50, %p51
      %p53 = scmp.ne.s32.totalorder %s42, %s45
      %p54 = scmp.eq.s32.totalorder %s16, 15
      %p55 = por %p53, %p54
      %p56 = scmp.ne.s32.totalorder %s45, %s46
      %p57 = scmp.eq.s32.totalorder %s16, 0
      %p58 = por %p56, %p57
      %p59 = scmp.ne.s32.totalorder %s45, %s46
      %p60 = scmp.eq.s32.totalorder %s17, 15
      %p61 = por %p59, %p60
      %p63 = scmp.ne.s32.totalorder %s46, %s62
      %p64 = scmp.eq.s32.totalorder %s17, 0
      %p65 = por %p63, %p64
      %s67 = sadd.s32 %s66, 1
      %p70 = scmp.eq.s32.totalorder %s11, 15
      %p71 = scmp.ne.s32.totalorder %s66, %s68
      %p72 = scmp.eq.s32.totalorder %s11, 0
      %p73 = por %p71, %p72
      %p74 = scmp.ne.s32.totalorder %s66, %s68
      %p75 = scmp.eq.s32.totalorder %s16, 15
      %p76 = por %p74, %p75
      %p77 = scmp.ne.s32.totalorder %s68, %s69
      %p78 = scmp.eq.s32.totalorder %s16, 0
      %p79 = por %p77, %p78
      %p80 = scmp.ne.s32.totalorder %s68, %s69
      %p81 = scmp.eq.s32.totalorder %s17, 15
      %p82 = por %p80, %p81
      %p84 = scmp.ne.s32.totalorder %s69, %s83
      %p85 = scmp.eq.s32.totalorder %s17, 0
      %p86 = por %p84, %p85
      %s88 = sadd.s32 %s87, 1
      %p91 = scmp.eq.s32.totalorder %s11, 15
      %p92 = scmp.ne.s32.totalorder %s87, %s89
      %p93 = scmp.eq.s32.totalorder %s11, 0
      %p94 = por %p92, %p93
      %p95 = scmp.ne.s32.totalorder %s87, %s89
      %p96 = scmp.eq.s32.totalorder %s16, 15
      %p97 = por %p95, %p96
      %p98 = scmp.ne.s32.totalorder %s89, %s90
      %p99 = scmp.eq.s32.totalorder %s16, 0
      %p100 = por %p98, %p99
      %p101 = scmp.ne.s32.totalorder %s89, %s90
      %p102 = scmp.eq.s32.totalorder %s17, 15
      %p103 = por %p101, %p102
      %p105 = scmp.ne.s32.totalorder %s90, %s104
      %p106 = scmp.eq.s32.totalorder %s17, 0
      %p107 = por %p105, %p106
      %s109 = sadd.s32 %s108, 1
      %p112 = scmp.eq.s32.totalorder %s11, 15
      %p113 = scmp.ne.s32.totalorder %s108, %s110
      %p114 = scmp.eq.s32.totalorder %s11, 0
      %p115 = por %p113, %p114
      %p116 = scmp.ne.s32.totalorder %s108, %s110
      %p117 = scmp.eq.s32.totalorder %s16, 15
      %p118 = por %p116, %p117
      %p119 = scmp.ne.s32.totalorder %s110, %s111
      %p120 = scmp.eq.s32.totalorder %s16, 0
      %p121 = por %p119, %p120
      %p122 = scmp.ne.s32.totalorder %s110, %s111
      %p123 = scmp.eq.s32.totalorder %s17, 15
      %p124 = por %p122, %p123
      %p126 = scmp.ne.s32.totalorder %s111, %s125
      %p127 = scmp.eq.s32.totalorder %s17, 0
      %p128 = por %p126, %p127
      %s130 = sadd.s32 %s129, 1
      %p133 = scmp.eq.s32.totalorder %s11, 15
      %p134 = scmp.ne.s32.totalorder %s129, %s131
      %p135 = scmp.eq.s32.totalorder %s11, 0
      %p136 = por %p134, %p135
      %p137 = scmp.ne.s32.totalorder %s129, %s131
      %p138 = scmp.eq.s32.totalorder %s16, 15
      %p139 = por %p137, %p138
      %p140 = scmp.ne.s32.totalorder %s131, %s132
      %p141 = scmp.eq.s32.totalorder %s16, 0
      %p142 = por %p140, %p141
      %p143 = scmp.ne.s32.totalorder %s131, %s132
      %p144 = scmp.eq.s32.totalorder %s17, 15
      %p145 = por %p143, %p144
      %p147 = scmp.ne.s32.totalorder %s132, %s146
      %p148 = scmp.eq.s32.totalorder %s17, 0
      %p149 = por %p147, %p148
      %s151 = sadd.s32 %s150, 1
      %p154 = scmp.eq.s32.totalorder %s11, 15
      %p155 = scmp.ne.s32.totalorder %s150, %s152
      %p156 = scmp.eq.s32.totalorder %s11, 0
      %p157 = por %p155, %p156
      %p158 = scmp.ne.s32.totalorder %s150, %s152
      %p159 = scmp.eq.s32.totalorder %s16, 15
      %p160 = por %p158, %p159
      %p161 = scmp.ne.s32.totalorder %s152, %s153
      %p162 = scmp.eq.s32.totalorder %s16, 0
      %p163 = por %p161, %p162
      %p164 = scmp.ne.s32.totalorder %s152, %s153
      %p165 = scmp.eq.s32.totalorder %s17, 15
      %p166 = por %p164, %p165
      %p168 = scmp.ne.s32.totalorder %s153, %s167
      %p169 = scmp.eq.s32.totalorder %s17, 0
      %p170 = por %p168, %p169
      %p171 = scmp.le.s32.totalorder 1, %s11
      %p172 = scmp.lt.s32.totalorder %s11, 17
      %p173 = pnand %p171, %p172
      %p174 = pneg %p173
      // Predicated region
      $region9: #{arma_forward.1} parent=5 // pred_check
        _
      $region10: #{arma_forward.1} parent=5 // pred_check_branch
        %176 = sbr.rel (%p173) target = $region12
      $region11: #{arma_forward.1} parent=5 // pred_region
        %s177 = ssub.s32 %s11, 1
        // Predicated region
        $region13: #{arma_forward.1} parent=11 // pred_check
          %p178 = pneg %p79
        $region14: #{arma_forward.1} parent=11 // pred_check_branch
          %180 = sbr.rel (%p178) target = $region16
        $region15: #{arma_forward.1} parent=11 // pred_region
          _
        $region16: #{arma_forward.1} parent=11 // pred_fallthru
          _
        // Predicated region
        $region17: #{arma_forward.1} parent=11 // pred_check
          %p181 = pneg %p100
        $region18: #{arma_forward.1} parent=11 // pred_check_branch
          %183 = sbr.rel (%p181) target = $region20
        $region19: #{arma_forward.1} parent=11 // pred_region
          _
        $region20: #{arma_forward.1} parent=11 // pred_fallthru
          _
        // Predicated region
        $region21: #{arma_forward.1} parent=11 // pred_check
          %p184 = pneg %p121
        $region22: #{arma_forward.1} parent=11 // pred_check_branch
          %186 = sbr.rel (%p184) target = $region24
        $region23: #{arma_forward.1} parent=11 // pred_region
          _
        $region24: #{arma_forward.1} parent=11 // pred_fallthru
          _
        // Predicated region
        $region25: #{arma_forward.1} parent=11 // pred_check
          %p187 = pneg %p142
        $region26: #{arma_forward.1} parent=11 // pred_check_branch
          %189 = sbr.rel (%p187) target = $region28
        $region27: #{arma_forward.1} parent=11 // pred_region
          _
        $region28: #{arma_forward.1} parent=11 // pred_fallthru
          _
      $region12: #{arma_forward.1} parent=5 // pred_fallthru
        _
      %p190 = scmp.lt.s32.totalorder %s11, 16
      // Predicated region
      $region29: #{arma_forward.1} parent=5 // pred_check
        %p191 = pneg %p190
      $region30: #{arma_forward.1} parent=5 // pred_check_branch
        %193 = sbr.rel (%p191) target = $region32
      $region31: #{arma_forward.1} parent=5 // pred_region
        // Predicated region
        $region33: #{arma_forward.1} parent=31 // pred_check
          %p194 = pneg %p52
        $region34: #{arma_forward.1} parent=31 // pred_check_branch
          %196 = sbr.rel (%p194) target = $region36
        $region35: #{arma_forward.1} parent=31 // pred_region
          %s197 = sand.u32 %s42, 1
          %s198 = sand.u32 %s42, 1
          %s199 = smul.addr %s198, 32
          %s200 = scalar_lea.vmem [#allocation5], %s199
          %s201 = smul.u32 8, %s19
          %s202 = smul.addr %s201, 2
          %s203 = sadd.s32 %s20, %s202
          %s204 = smul.addr %s203, 4
          %s205 = scalar_lea.vmem %s0, %s204
          // Predicated region
          $region37: #{arma_forward.1} parent=35 // pred_check
            _
          $region38: #{arma_forward.1} parent=35 // pred_check_branch
            %207 = sbr.rel (0) target = $region40
          $region39: #{arma_forward.1} parent=35 // pred_region
            // Predicated region
            $region41: #{arma_forward.1} parent=39 // pred_check
              _
            $region42: #{arma_forward.1} parent=39 // pred_check_branch
              %209 = sbr.rel target = $region44
            $region43: #{arma_forward.1} parent=39 // pred_region
              // Predicated region
              $region56: #{arma_forward.1} parent=43 // pred_check
                _
              $region57: #{arma_forward.1} parent=43 // pred_check_branch
                %238 = sbr.rel (0) target = $region59
              $region58: #{arma_forward.1} parent=43 // pred_region
                loop: start=0, step=1, limit=1
                $region60: #{arma_forward.1} parent=58 // loop_pre_header
                  _
                $region61: #{arma_forward.1} parent=58 // loop_header
                  %s240 = sphi 0, %s244
                  %p241 = scmp.ge.s32.totalorder %s240, 1
                  %s245 = sphi %s205, %s205
                  %s246 = sphi %s200, %s200
                $region62: #{arma_forward.1} parent=58 // loop_header_branch
                  %243 = sbr.rel (%p241) target = $region66
                $region63: #{arma_forward.1} parent=58 // loop_body
                  _
                $region64: #{arma_forward.1} parent=58 // loop_footer
                  %s244 = sadd.s32 1, %s240
                $region65: #{arma_forward.1} parent=58 // loop_footer_branch
                  %239 = sbr.rel target = $region61
                $region66: #{arma_forward.1} parent=58 // loop_exit
                  _
                loop: start=0, step=1, limit=1
                $region67: #{arma_forward.1} parent=58 // loop_pre_header
                  _
                $region68: #{arma_forward.1} parent=58 // loop_header
                  %s249 = sphi 0, %s253
                  %p250 = scmp.ge.s32.totalorder %s249, 1
                  %s254 = sphi %s205, %s205
                  %s255 = sphi %s200, %s200
                $region69: #{arma_forward.1} parent=58 // loop_header_branch
                  %252 = sbr.rel (%p250) target = $region73
                $region70: #{arma_forward.1} parent=58 // loop_body
                  %v256 = vld [vmem:[%s254] sm:$0xf]
                  %257 = vst [vmem:[%s255] sm:$0xf] %v256
                  %v258 = vld [vmem:[%s254 + $0x8] sm:$0xf]
                  %259 = vst [vmem:[%s255 + $0x4] sm:$0xf] %v258
                  %v260 = vld [vmem:[%s254 + $0x10] sm:$0xf]
                  %261 = vst [vmem:[%s255 + $0x8] sm:$0xf] %v260
                  %v262 = vld [vmem:[%s254 + $0x18] sm:$0xf]
                  %263 = vst [vmem:[%s255 + $0xc] sm:$0xf] %v262
                  %v264 = vld [vmem:[%s254 + $0x20] sm:$0xf]
                  %265 = vst [vmem:[%s255 + $0x10] sm:$0xf] %v264
                  %v266 = vld [vmem:[%s254 + $0x28] sm:$0xf]
                  %267 = vst [vmem:[%s255 + $0x14] sm:$0xf] %v266
                  %v268 = vld [vmem:[%s254 + $0x30] sm:$0xf]
                  %269 = vst [vmem:[%s255 + $0x18] sm:$0xf] %v268
                  %v270 = vld [vmem:[%s254 + $0x38] sm:$0xf]
                  %271 = vst [vmem:[%s255 + $0x1c] sm:$0xf] %v270
                $region71: #{arma_forward.1} parent=58 // loop_footer
                  %s253 = sadd.s32 1, %s249
                $region72: #{arma_forward.1} parent=58 // loop_footer_branch
                  %248 = sbr.rel target = $region68
                $region73: #{arma_forward.1} parent=58 // loop_exit
                  _
              $region59: #{arma_forward.1} parent=43 // pred_fallthru
                _
            $region44: #{arma_forward.1} parent=39 // pred_fallthru
              _
            // Predicated region
            $region45: #{arma_forward.1} parent=39 // pred_check
              _
            $region46: #{arma_forward.1} parent=39 // pred_check_branch
              %211 = sbr.rel (0) target = $region48
            $region47: #{arma_forward.1} parent=39 // pred_region
              loop: start=0, step=1, limit=1
              $region49: #{arma_forward.1} parent=47 // loop_pre_header
                _
              $region50: #{arma_forward.1} parent=47 // loop_header
                %s214 = sphi 0, %s218
                %p215 = scmp.ge.s32.totalorder %s214, 1
                %s219 = sphi %s205, %s205
                %s220 = sphi %s200, %s200
              $region51: #{arma_forward.1} parent=47 // loop_header_branch
                %217 = sbr.rel (%p215) target = $region55
              $region52: #{arma_forward.1} parent=47 // loop_body
                %v221 = vld [vmem:[%s219] sm:$0xf]
                %222 = vst [vmem:[%s220] sm:$0xf] %v221
                %v223 = vld [vmem:[%s219 + $0x8] sm:$0xf]
                %224 = vst [vmem:[%s220 + $0x4] sm:$0xf] %v223
                %v225 = vld [vmem:[%s219 + $0x10] sm:$0xf]
                %226 = vst [vmem:[%s220 + $0x8] sm:$0xf] %v225
                %v227 = vld [vmem:[%s219 + $0x18] sm:$0xf]
                %228 = vst [vmem:[%s220 + $0xc] sm:$0xf] %v227
                %v229 = vld [vmem:[%s219 + $0x20] sm:$0xf]
                %230 = vst [vmem:[%s220 + $0x10] sm:$0xf] %v229
                %v231 = vld [vmem:[%s219 + $0x28] sm:$0xf]
                %232 = vst [vmem:[%s220 + $0x14] sm:$0xf] %v231
                %v233 = vld [vmem:[%s219 + $0x30] sm:$0xf]
                %234 = vst [vmem:[%s220 + $0x18] sm:$0xf] %v233
                %v235 = vld [vmem:[%s219 + $0x38] sm:$0xf]
                %236 = vst [vmem:[%s220 + $0x1c] sm:$0xf] %v235
              $region53: #{arma_forward.1} parent=47 // loop_footer
                %s218 = sadd.s32 1, %s214
              $region54: #{arma_forward.1} parent=47 // loop_footer_branch
                %213 = sbr.rel target = $region50
              $region55: #{arma_forward.1} parent=47 // loop_exit
                _
            $region48: #{arma_forward.1} parent=39 // pred_fallthru
              _
          $region40: #{arma_forward.1} parent=35 // pred_fallthru
            _
          %272 = vnop
        $region36: #{arma_forward.1} parent=31 // pred_fallthru
          _
      $region32: #{arma_forward.1} parent=5 // pred_fallthru
        _
      %p273 = scmp.le.s32.totalorder 1, %s11
      %p274 = scmp.lt.s32.totalorder %s11, 17
      %p275 = pnand %p273, %p274
      %p276 = pneg %p275
      // Predicated region
      $region74: #{arma_forward.1} parent=5 // pred_check
        _
      $region75: #{arma_forward.1} parent=5 // pred_check_branch
        %278 = sbr.rel (%p275) target = $region77
      $region76: #{arma_forward.1} parent=5 // pred_region
        %s279 = ssub.s32 %s11, 1
        %s280 = sand.u32 %s45, 1
        %s281 = sand.u32 %s45, 1
        %s282 = smul.addr %s281, 32
        %s283 = scalar_lea.vmem [#allocation5], %s282
        // Predicated region
        $region78: #{arma_forward.1} parent=76 // pred_check
          %p284 = pneg %p58
        $region79: #{arma_forward.1} parent=76 // pred_check_branch
          %286 = sbr.rel (%p284) target = $region81
        $region80: #{arma_forward.1} parent=76 // pred_region
          _
        $region81: #{arma_forward.1} parent=76 // pred_fallthru
          _
        %s287 = sand.u32 %s45, 1
        %s288 = sand.u32 %s45, 1
        %s289 = smul.addr %s288, 32
        %s290 = scalar_lea.vmem [#allocation5], %s289
        %p291 = pneg %p58
        %p292 = pneg %p55
        %p293 = pneg %p79
        %p294 = pneg %p76
        %p295 = pneg %p100
        %p296 = pneg %p97
        %p297 = pneg %p121
        %p298 = pneg %p118
        %p299 = pneg %p142
        %p300 = pneg %p139
        %p301 = pneg %p163
        %p302 = pneg %p160
        %s303 = smul.u32 8, %s22
        %p305 = scmp.lt.s32.totalorder %s21, 0
        %s306 = ssub.s32 0, %s21
        %s307 = scalar_select %p305, %s306, %s21
        %s308 = sand.u32 %s307, 1
        %s309 = ssub.s32 0, %s308
        %s310 = scalar_select %p305, %s309, %s308
        %p311 = scmp.ne.s32.totalorder %s310, 0
        %p312 = scmp.lt.s32.totalorder %s310, 0
        %p313 = pnand %p312, %p311
        %p314 = pneg %p313
        %s315 = sadd.s32 %s310, 2
        %s316 = scalar_select %p314, %s315, %s310
        %s317 = sadd.s32 %s21, 1
        %p318 = scmp.lt.s32.totalorder %s317, 0
        %s319 = ssub.s32 0, %s317
        %s320 = scalar_select %p318, %s319, %s317
        %s321 = sand.u32 %s320, 1
        %s322 = ssub.s32 0, %s321
        %s323 = scalar_select %p318, %s322, %s321
        %p324 = scmp.ne.s32.totalorder %s323, 0
        %p325 = scmp.lt.s32.totalorder %s323, 0
        %p326 = pnand %p325, %p324
        %p327 = pneg %p326
        %s328 = sadd.s32 %s323, 2
        %s329 = scalar_select %p327, %s328, %s323
        %p330 = scmp.eq.s32.totalorder %s21, 0
        %p331 = scmp.eq.s32.totalorder %s22, 0
        %p332 = pnand %p330, %p331
        %p333 = pneg %p332
        %p334 = scmp.eq.s32.totalorder %s23, 0
        %p335 = pnand %p333, %p334
        %p336 = pneg %p335
        // Predicated region
        $region82: #{arma_forward.1} parent=76 // pred_check
          _
        $region83: #{arma_forward.1} parent=76 // pred_check_branch
          %338 = sbr.rel (%p335) target = $region85
        $region84: #{arma_forward.1} parent=76 // pred_region
          %v339 = vld [vmem:[%s1] sm:$0xff]
          %v340 = vld [vmem:[%s1 + $0x8] sm:$0xff]
          %v341 = vld [vmem:[%s1 + $0x10] sm:$0xff]
          %v342 = vld [vmem:[%s1 + $0x18] sm:$0xff]
          %v343 = vld [vmem:[%s1 + $0x20] sm:$0xff]
          %v344 = vld [vmem:[%s1 + $0x28] sm:$0xff]
          %v345 = vld [vmem:[%s1 + $0x30] sm:$0xff]
          %v346 = vld [vmem:[%s1 + $0x38] sm:$0xff]
          %v347 = vld [vmem:[%s1 + $0x40] sm:$0xff]
          %v348 = vld [vmem:[%s1 + $0x48] sm:$0xff]
          %v349 = vld [vmem:[%s1 + $0x50] sm:$0xff]
          %v350 = vld [vmem:[%s1 + $0x58] sm:$0xff]
          %v351 = vld [vmem:[%s1 + $0x60] sm:$0xff]
          %v352 = vld [vmem:[%s1 + $0x68] sm:$0xff]
          %v353 = vld [vmem:[%s1 + $0x70] sm:$0xff]
          %v354 = vld [vmem:[%s1 + $0x78] sm:$0xff]
          %v355 = vld [vmem:[%s1 + $0x80] sm:$0xff]
          %v356 = vld [vmem:[%s1 + $0x88] sm:$0xff]
          %v357 = vld [vmem:[%s1 + $0x90] sm:$0xff]
          %v358 = vld [vmem:[%s1 + $0x98] sm:$0xff]
          %v359 = vld [vmem:[%s1 + $0xa0] sm:$0xff]
          %v360 = vld [vmem:[%s1 + $0xa8] sm:$0xff]
          %v361 = vld [vmem:[%s1 + $0xb0] sm:$0xff]
          %v362 = vld [vmem:[%s1 + $0xb8] sm:$0xff]
          %v363 = vld [vmem:[%s1 + $0xc0] sm:$0xff]
          %v364 = vld [vmem:[%s1 + $0xc8] sm:$0xff]
          %v365 = vld [vmem:[%s1 + $0xd0] sm:$0xff]
          %v366 = vld [vmem:[%s1 + $0xd8] sm:$0xff]
          %v367 = vld [vmem:[%s1 + $0xe0] sm:$0xff]
          %v368 = vld [vmem:[%s1 + $0xe8] sm:$0xff]
          %v369 = vld [vmem:[%s1 + $0xf0] sm:$0xff]
          %v370 = vld [vmem:[%s1 + $0xf8] sm:$0xff]
          %371 = vst [vmem:[#allocation2] sm:$0xff] %v339
          %372 = vst [vmem:[#allocation2 + $0x8] sm:$0xff] %v340
          %373 = vst [vmem:[#allocation2 + $0x10] sm:$0xff] %v341
          %374 = vst [vmem:[#allocation2 + $0x18] sm:$0xff] %v342
          %375 = vst [vmem:[#allocation2 + $0x20] sm:$0xff] %v343
          %376 = vst [vmem:[#allocation2 + $0x28] sm:$0xff] %v344
          %377 = vst [vmem:[#allocation2 + $0x30] sm:$0xff] %v345
          %378 = vst [vmem:[#allocation2 + $0x38] sm:$0xff] %v346
          %379 = vst [vmem:[#allocation2 + $0x40] sm:$0xff] %v347
          %380 = vst [vmem:[#allocation2 + $0x48] sm:$0xff] %v348
          %381 = vst [vmem:[#allocation2 + $0x50] sm:$0xff] %v349
          %382 = vst [vmem:[#allocation2 + $0x58] sm:$0xff] %v350
          %383 = vst [vmem:[#allocation2 + $0x60] sm:$0xff] %v351
          %384 = vst [vmem:[#allocation2 + $0x68] sm:$0xff] %v352
          %385 = vst [vmem:[#allocation2 + $0x70] sm:$0xff] %v353
          %386 = vst [vmem:[#allocation2 + $0x78] sm:$0xff] %v354
          %387 = vst [vmem:[#allocation2 + $0x80] sm:$0xff] %v355
          %388 = vst [vmem:[#allocation2 + $0x88] sm:$0xff] %v356
          %389 = vst [vmem:[#allocation2 + $0x90] sm:$0xff] %v357
          %390 = vst [vmem:[#allocation2 + $0x98] sm:$0xff] %v358
          %391 = vst [vmem:[#allocation2 + $0xa0] sm:$0xff] %v359
          %392 = vst [vmem:[#allocation2 + $0xa8] sm:$0xff] %v360
          %393 = vst [vmem:[#allocation2 + $0xb0] sm:$0xff] %v361
          %394 = vst [vmem:[#allocation2 + $0xb8] sm:$0xff] %v362
          %395 = vst [vmem:[#allocation2 + $0xc0] sm:$0xff] %v363
          %396 = vst [vmem:[#allocation2 + $0xc8] sm:$0xff] %v364
          %397 = vst [vmem:[#allocation2 + $0xd0] sm:$0xff] %v365
          %398 = vst [vmem:[#allocation2 + $0xd8] sm:$0xff] %v366
          %399 = vst [vmem:[#allocation2 + $0xe0] sm:$0xff] %v367
          %400 = vst [vmem:[#allocation2 + $0xe8] sm:$0xff] %v368
          %401 = vst [vmem:[#allocation2 + $0xf0] sm:$0xff] %v369
          %402 = vst [vmem:[#allocation2 + $0xf8] sm:$0xff] %v370
          %v403 = vld [vmem:[%s3] sm:$0xff]
          %v404 = vld [vmem:[%s3 + $0x8] sm:$0xff]
          %v405 = vld [vmem:[%s3 + $0x10] sm:$0xff]
          %v406 = vld [vmem:[%s3 + $0x18] sm:$0xff]
          %v407 = vld [vmem:[%s3 + $0x20] sm:$0xff]
          %v408 = vld [vmem:[%s3 + $0x28] sm:$0xff]
          %v409 = vld [vmem:[%s3 + $0x30] sm:$0xff]
          %v410 = vld [vmem:[%s3 + $0x38] sm:$0xff]
          %v411 = vld [vmem:[%s3 + $0x40] sm:$0xff]
          %v412 = vld [vmem:[%s3 + $0x48] sm:$0xff]
          %v413 = vld [vmem:[%s3 + $0x50] sm:$0xff]
          %v414 = vld [vmem:[%s3 + $0x58] sm:$0xff]
          %v415 = vld [vmem:[%s3 + $0x60] sm:$0xff]
          %v416 = vld [vmem:[%s3 + $0x68] sm:$0xff]
          %v417 = vld [vmem:[%s3 + $0x70] sm:$0xff]
          %v418 = vld [vmem:[%s3 + $0x78] sm:$0xff]
          %419 = vmatprep.subr.mxu0 0.0
          %420 = vmatpush1.msra.mxu0 %v403
          %421 = vmatprep.subr.mxu0 0.0
          %422 = vmatpush1.msra.mxu0 %v404
          %423 = vmatprep.subr.mxu0 0.0
          %424 = vmatpush1.msra.mxu0 %v405
          %425 = vmatprep.subr.mxu0 0.0
          %426 = vmatpush1.msra.mxu0 %v406
          %427 = vmatprep.subr.mxu0 0.0
          %428 = vmatpush1.msra.mxu0 %v407
          %429 = vmatprep.subr.mxu0 0.0
          %430 = vmatpush1.msra.mxu0 %v408
          %431 = vmatprep.subr.mxu0 0.0
          %432 = vmatpush1.msra.mxu0 %v409
          %433 = vmatprep.subr.mxu0 0.0
          %434 = vmatpush1.msra.mxu0 %v410
          %435 = vmatprep.subr.mxu0 0.0
          %436 = vmatpush1.msra.mxu0 %v411
          %437 = vmatprep.subr.mxu0 0.0
          %438 = vmatpush1.msra.mxu0 %v412
          %439 = vmatprep.subr.mxu0 0.0
          %440 = vmatpush1.msra.mxu0 %v413
          %441 = vmatprep.subr.mxu0 0.0
          %442 = vmatpush1.msra.mxu0 %v414
          %443 = vmatprep.subr.mxu0 0.0
          %444 = vmatpush1.msra.mxu0 %v415
          %445 = vmatprep.subr.mxu0 0.0
          %446 = vmatpush1.msra.mxu0 %v416
          %447 = vmatprep.subr.mxu0 0.0
          %448 = vmatpush1.msra.mxu0 %v417
          %449 = vmatprep.subr.mxu0 0.0
          %450 = vmatpush1.msra.mxu0 %v418
          %451 = vmatprep.subr.mxu0 0.0
          %452 = vmatpush1.msra.mxu0 0.0
          %453 = vmatprep.subr.mxu0 0.0
          %454 = vmatpush1.msra.mxu0 0.0
          %455 = vmatprep.subr.mxu0 0.0
          %456 = vmatpush1.msra.mxu0 0.0
          %457 = vmatprep.subr.mxu0 0.0
          %458 = vmatpush1.msra.mxu0 0.0
          %459 = vmatprep.subr.mxu0 0.0
          %460 = vmatpush1.msra.mxu0 0.0
          %461 = vmatprep.subr.mxu0 0.0
          %462 = vmatpush1.msra.mxu0 0.0
          %463 = vmatprep.subr.mxu0 0.0
          %464 = vmatpush1.msra.mxu0 0.0
          %465 = vmatprep.subr.mxu0 0.0
          %466 = vmatpush1.msra.mxu0 0.0
          %467 = vmatprep.subr.mxu0 0.0
          %468 = vmatpush1.msra.mxu0 0.0
          %469 = vmatprep.subr.mxu0 0.0
          %470 = vmatpush1.msra.mxu0 0.0
          %471 = vmatprep.subr.mxu0 0.0
          %472 = vmatpush1.msra.mxu0 0.0
          %473 = vmatprep.subr.mxu0 0.0
          %474 = vmatpush1.msra.mxu0 0.0
          %475 = vmatprep.subr.mxu0 0.0
          %476 = vmatpush1.msra.mxu0 0.0
          %477 = vmatprep.subr.mxu0 0.0
          %478 = vmatpush1.msra.mxu0 0.0
          %479 = vmatprep.subr.mxu0 0.0
          %480 = vmatpush1.msra.mxu0 0.0
          %481 = vmatprep.subr.mxu0 0.0
          %482 = vmatpush1.msra.mxu0 0.0
          %483 = vmatprep.mubr.f32.mxu0 0.0
          %484 = vmatmul.mubr.f32.gmra.mrb[0].mxu0 %v339
          %v485 = vpop.f32.mrb[0].mxu0
          %v486 = vadd.f32 0.0, %v485
          %v487 = vpop.f32.mrb[0].mxu0
          %488 = vmatprep.mubr.f32.mxu0 0.0
          %489 = vmatmul.mubr.f32.gmra.mrb[0].mxu0 %v340
          %v490 = vpop.f32.mrb[0].mxu0
          %v491 = vadd.f32 0.0, %v490
          %v492 = vpop.f32.mrb[0].mxu0
          %493 = vmatprep.mubr.f32.mxu0 0.0
          %494 = vmatmul.mubr.f32.gmra.mrb[0].mxu0 %v341
          %v495 = vpop.f32.mrb[0].mxu0
          %v496 = vadd.f32 0.0, %v495
          %v497 = vpop.f32.mrb[0].mxu0
          %498 = vmatprep.mubr.f32.mxu0 0.0
          %499 = vmatmul.mubr.f32.gmra.mrb[0].mxu0 %v342
          %v500 = vpop.f32.mrb[0].mxu0
          %v501 = vadd.f32 0.0, %v500
          %v502 = vpop.f32.mrb[0].mxu0
          %503 = vmatprep.mubr.f32.mxu0 0.0
          %504 = vmatmul.mubr.f32.gmra.mrb[0].mxu0 %v343
          %v505 = vpop.f32.mrb[0].mxu0
          %v506 = vadd.f32 0.0, %v505
          %v507 = vpop.f32.mrb[0].mxu0
          %508 = vmatprep.mubr.f32.mxu0 0.0
          %509 = vmatmul.mubr.f32.gmra.mrb[0].mxu0 %v344
          %v510 = vpop.f32.mrb[0].mxu0
          %v511 = vadd.f32 0.0, %v510
          %v512 = vpop.f32.mrb[0].mxu0
          %513 = vmatprep.mubr.f32.mxu0 0.0
          %514 = vmatmul.mubr.f32.gmra.mrb[0].mxu0 %v345
          %v515 = vpop.f32.mrb[0].mxu0
          %v516 = vadd.f32 0.0, %v515
          %v517 = vpop.f32.mrb[0].mxu0
          %518 = vmatprep.mubr.f32.mxu0 0.0
          %519 = vmatmul.mubr.f32.gmra.mrb[0].mxu0 %v346
          %v520 = vpop.f32.mrb[0].mxu0
          %v521 = vadd.f32 0.0, %v520
          %v522 = vpop.f32.mrb[0].mxu0
          %523 = vmatprep.mubr.f32.mxu0 0.0
          %524 = vmatmul.mubr.f32.gmra.mrb[0].mxu0 %v347
          %v525 = vpop.f32.mrb[0].mxu0
          %v526 = vadd.f32 0.0, %v525
          %v527 = vpop.f32.mrb[0].mxu0
          %528 = vmatprep.mubr.f32.mxu0 0.0
          %529 = vmatmul.mubr.f32.gmra.mrb[0].mxu0 %v348
          %v530 = vpop.f32.mrb[0].mxu0
          %v531 = vadd.f32 0.0, %v530
          %v532 = vpop.f32.mrb[0].mxu0
          %533 = vmatprep.mubr.f32.mxu0 0.0
          %534 = vmatmul.mubr.f32.gmra.mrb[0].mxu0 %v349
          %v535 = vpop.f32.mrb[0].mxu0
          %v536 = vadd.f32 0.0, %v535
          %v537 = vpop.f32.mrb[0].mxu0
          %538 = vmatprep.mubr.f32.mxu0 0.0
          %539 = vmatmul.mubr.f32.gmra.mrb[0].mxu0 %v350
          %v540 = vpop.f32.mrb[0].mxu0
          %v541 = vadd.f32 0.0, %v540
          %v542 = vpop.f32.mrb[0].mxu0
          %543 = vmatprep.mubr.f32.mxu0 0.0
          %544 = vmatmul.mubr.f32.gmra.mrb[0].mxu0 %v351
          %v545 = vpop.f32.mrb[0].mxu0
          %v546 = vadd.f32 0.0, %v545
          %v547 = vpop.f32.mrb[0].mxu0
          %548 = vmatprep.mubr.f32.mxu0 0.0
          %549 = vmatmul.mubr.f32.gmra.mrb[0].mxu0 %v352
          %v550 = vpop.f32.mrb[0].mxu0
          %v551 = vadd.f32 0.0, %v550
          %v552 = vpop.f32.mrb[0].mxu0
          %553 = vmatprep.mubr.f32.mxu0 0.0
          %554 = vmatmul.mubr.f32.gmra.mrb[0].mxu0 %v353
          %v555 = vpop.f32.mrb[0].mxu0
          %v556 = vadd.f32 0.0, %v555
          %v557 = vpop.f32.mrb[0].mxu0
          %558 = vmatprep.mubr.f32.mxu0 0.0
          %559 = vmatmul.mubr.f32.gmra.mrb[0].mxu0 %v354
          %v560 = vpop.f32.mrb[0].mxu0
          %v561 = vadd.f32 0.0, %v560
          %v562 = vpop.f32.mrb[0].mxu0
          %563 = vmatprep.mubr.f32.mxu0 0.0
          %564 = vmatmul.mubr.f32.gmra.mrb[0].mxu0 %v355
          %v565 = vpop.f32.mrb[0].mxu0
          %v566 = vadd.f32 0.0, %v565
          %v567 = vpop.f32.mrb[0].mxu0
          %568 = vmatprep.mubr.f32.mxu0 0.0
          %569 = vmatmul.mubr.f32.gmra.mrb[0].mxu0 %v356
          %v570 = vpop.f32.mrb[0].mxu0
          %v571 = vadd.f32 0.0, %v570
          %v572 = vpop.f32.mrb[0].mxu0
          %573 = vmatprep.mubr.f32.mxu0 0.0
          %574 = vmatmul.mubr.f32.gmra.mrb[0].mxu0 %v357
          %v575 = vpop.f32.mrb[0].mxu0
          %v576 = vadd.f32 0.0, %v575
          %v577 = vpop.f32.mrb[0].mxu0
          %578 = vmatprep.mubr.f32.mxu0 0.0
          %579 = vmatmul.mubr.f32.gmra.mrb[0].mxu0 %v358
          %v580 = vpop.f32.mrb[0].mxu0
          %v581 = vadd.f32 0.0, %v580
          %v582 = vpop.f32.mrb[0].mxu0
          %583 = vmatprep.mubr.f32.mxu0 0.0
          %584 = vmatmul.mubr.f32.gmra.mrb[0].mxu0 %v359
          %v585 = vpop.f32.mrb[0].mxu0
          %v586 = vadd.f32 0.0, %v585
          %v587 = vpop.f32.mrb[0].mxu0
          %588 = vmatprep.mubr.f32.mxu0 0.0
          %589 = vmatmul.mubr.f32.gmra.mrb[0].mxu0 %v360
          %v590 = vpop.f32.mrb[0].mxu0
          %v591 = vadd.f32 0.0, %v590
          %v592 = vpop.f32.mrb[0].mxu0
          %593 = vmatprep.mubr.f32.mxu0 0.0
          %594 = vmatmul.mubr.f32.gmra.mrb[0].mxu0 %v361
          %v595 = vpop.f32.mrb[0].mxu0
          %v596 = vadd.f32 0.0, %v595
          %v597 = vpop.f32.mrb[0].mxu0
          %598 = vmatprep.mubr.f32.mxu0 0.0
          %599 = vmatmul.mubr.f32.gmra.mrb[0].mxu0 %v362
          %v600 = vpop.f32.mrb[0].mxu0
          %v601 = vadd.f32 0.0, %v600
          %v602 = vpop.f32.mrb[0].mxu0
          %603 = vmatprep.mubr.f32.mxu0 0.0
          %604 = vmatmul.mubr.f32.gmra.mrb[0].mxu0 %v363
          %v605 = vpop.f32.mrb[0].mxu0
          %v606 = vadd.f32 0.0, %v605
          %v607 = vpop.f32.mrb[0].mxu0
          %608 = vmatprep.mubr.f32.mxu0 0.0
          %609 = vmatmul.mubr.f32.gmra.mrb[0].mxu0 %v364
          %v610 = vpop.f32.mrb[0].mxu0
          %v611 = vadd.f32 0.0, %v610
          %v612 = vpop.f32.mrb[0].mxu0
          %613 = vmatprep.mubr.f32.mxu0 0.0
          %614 = vmatmul.mubr.f32.gmra.mrb[0].mxu0 %v365
          %v615 = vpop.f32.mrb[0].mxu0
          %v616 = vadd.f32 0.0, %v615
          %v617 = vpop.f32.mrb[0].mxu0
          %618 = vmatprep.mubr.f32.mxu0 0.0
          %619 = vmatmul.mubr.f32.gmra.mrb[0].mxu0 %v366
          %v620 = vpop.f32.mrb[0].mxu0
          %v621 = vadd.f32 0.0, %v620
          %v622 = vpop.f32.mrb[0].mxu0
          %623 = vmatprep.mubr.f32.mxu0 0.0
          %624 = vmatmul.mubr.f32.gmra.mrb[0].mxu0 %v367
          %v625 = vpop.f32.mrb[0].mxu0
          %v626 = vadd.f32 0.0, %v625
          %v627 = vpop.f32.mrb[0].mxu0
          %628 = vmatprep.mubr.f32.mxu0 0.0
          %629 = vmatmul.mubr.f32.gmra.mrb[0].mxu0 %v368
          %v630 = vpop.f32.mrb[0].mxu0
          %v631 = vadd.f32 0.0, %v630
          %v632 = vpop.f32.mrb[0].mxu0
          %633 = vmatprep.mubr.f32.mxu0 0.0
          %634 = vmatmul.mubr.f32.gmra.mrb[0].mxu0 %v369
          %v635 = vpop.f32.mrb[0].mxu0
          %v636 = vadd.f32 0.0, %v635
          %v637 = vpop.f32.mrb[0].mxu0
          %638 = vmatprep.mubr.f32.mxu0 0.0
          %639 = vmatmul.mubr.f32.gmra.mrb[0].mxu0 %v370
          %v640 = vpop.f32.mrb[0].mxu0
          %v641 = vadd.f32 0.0, %v640
          %v642 = vpop.f32.mrb[0].mxu0
          %643 = vdwg.mxu0
          %v644 = vmul.f32 %v486, 2.0
          %v645 = vmul.f32 %v491, 2.0
          %v646 = vmul.f32 %v496, 2.0
          %v647 = vmul.f32 %v501, 2.0
          %v648 = vmul.f32 %v506, 2.0
          %v649 = vmul.f32 %v511, 2.0
          %v650 = vmul.f32 %v516, 2.0
          %v651 = vmul.f32 %v521, 2.0
          %v652 = vmul.f32 %v526, 2.0
          %v653 = vmul.f32 %v531, 2.0
          %v654 = vmul.f32 %v536, 2.0
          %v655 = vmul.f32 %v541, 2.0
          %v656 = vmul.f32 %v546, 2.0
          %v657 = vmul.f32 %v551, 2.0
          %v658 = vmul.f32 %v556, 2.0
          %v659 = vmul.f32 %v561, 2.0
          %v660 = vmul.f32 %v566, 2.0
          %v661 = vmul.f32 %v571, 2.0
          %v662 = vmul.f32 %v576, 2.0
          %v663 = vmul.f32 %v581, 2.0
          %v664 = vmul.f32 %v586, 2.0
          %v665 = vmul.f32 %v591, 2.0
          %v666 = vmul.f32 %v596, 2.0
          %v667 = vmul.f32 %v601, 2.0
          %v668 = vmul.f32 %v606, 2.0
          %v669 = vmul.f32 %v611, 2.0
          %v670 = vmul.f32 %v616, 2.0
          %v671 = vmul.f32 %v621, 2.0
          %v672 = vmul.f32 %v626, 2.0
          %v673 = vmul.f32 %v631, 2.0
          %v674 = vmul.f32 %v636, 2.0
          %v675 = vmul.f32 %v641, 2.0
          %676 = vst [vmem:[#allocation4] sm:$0xff] %v644
          %677 = vst [vmem:[#allocation4 + $0x8] sm:$0xff] %v645
          %678 = vst [vmem:[#allocation4 + $0x10] sm:$0xff] %v646
          %679 = vst [vmem:[#allocation4 + $0x18] sm:$0xff] %v647
          %680 = vst [vmem:[#allocation4 + $0x20] sm:$0xff] %v648
          %681 = vst [vmem:[#allocation4 + $0x28] sm:$0xff] %v649
          %682 = vst [vmem:[#allocation4 + $0x30] sm:$0xff] %v650
          %683 = vst [vmem:[#allocation4 + $0x38] sm:$0xff] %v651
          %684 = vst [vmem:[#allocation4 + $0x40] sm:$0xff] %v652
          %685 = vst [vmem:[#allocation4 + $0x48] sm:$0xff] %v653
          %686 = vst [vmem:[#allocation4 + $0x50] sm:$0xff] %v654
          %687 = vst [vmem:[#allocation4 + $0x58] sm:$0xff] %v655
          %688 = vst [vmem:[#allocation4 + $0x60] sm:$0xff] %v656
          %689 = vst [vmem:[#allocation4 + $0x68] sm:$0xff] %v657
          %690 = vst [vmem:[#allocation4 + $0x70] sm:$0xff] %v658
          %691 = vst [vmem:[#allocation4 + $0x78] sm:$0xff] %v659
          %692 = vst [vmem:[#allocation4 + $0x80] sm:$0xff] %v660
          %693 = vst [vmem:[#allocation4 + $0x88] sm:$0xff] %v661
          %694 = vst [vmem:[#allocation4 + $0x90] sm:$0xff] %v662
          %695 = vst [vmem:[#allocation4 + $0x98] sm:$0xff] %v663
          %696 = vst [vmem:[#allocation4 + $0xa0] sm:$0xff] %v664
          %697 = vst [vmem:[#allocation4 + $0xa8] sm:$0xff] %v665
          %698 = vst [vmem:[#allocation4 + $0xb0] sm:$0xff] %v666
          %699 = vst [vmem:[#allocation4 + $0xb8] sm:$0xff] %v667
          %700 = vst [vmem:[#allocation4 + $0xc0] sm:$0xff] %v668
          %701 = vst [vmem:[#allocation4 + $0xc8] sm:$0xff] %v669
          %702 = vst [vmem:[#allocation4 + $0xd0] sm:$0xff] %v670
          %703 = vst [vmem:[#allocation4 + $0xd8] sm:$0xff] %v671
          %704 = vst [vmem:[#allocation4 + $0xe0] sm:$0xff] %v672
          %705 = vst [vmem:[#allocation4 + $0xe8] sm:$0xff] %v673
          %706 = vst [vmem:[#allocation4 + $0xf0] sm:$0xff] %v674
          %707 = vst [vmem:[#allocation4 + $0xf8] sm:$0xff] %v675
          %s708 = scalar_lea.vmem [#allocation2], 256
          %709 = vst [vmem:[%s708] sm:$0xff] %v339
          %710 = vst [vmem:[%s708 + $0x8] sm:$0xff] %v340
          %711 = vst [vmem:[%s708 + $0x10] sm:$0xff] %v341
          %712 = vst [vmem:[%s708 + $0x18] sm:$0xff] %v342
          %713 = vst [vmem:[%s708 + $0x20] sm:$0xff] %v343
          %714 = vst [vmem:[%s708 + $0x28] sm:$0xff] %v344
          %715 = vst [vmem:[%s708 + $0x30] sm:$0xff] %v345
          %716 = vst [vmem:[%s708 + $0x38] sm:$0xff] %v346
          %717 = vst [vmem:[%s708 + $0x40] sm:$0xff] %v347
          %718 = vst [vmem:[%s708 + $0x48] sm:$0xff] %v348
          %719 = vst [vmem:[%s708 + $0x50] sm:$0xff] %v349
          %720 = vst [vmem:[%s708 + $0x58] sm:$0xff] %v350
          %721 = vst [vmem:[%s708 + $0x60] sm:$0xff] %v351
          %722 = vst [vmem:[%s708 + $0x68] sm:$0xff] %v352
          %723 = vst [vmem:[%s708 + $0x70] sm:$0xff] %v353
          %724 = vst [vmem:[%s708 + $0x78] sm:$0xff] %v354
          %725 = vst [vmem:[%s708 + $0x80] sm:$0xff] %v355
          %726 = vst [vmem:[%s708 + $0x88] sm:$0xff] %v356
          %727 = vst [vmem:[%s708 + $0x90] sm:$0xff] %v357
          %728 = vst [vmem:[%s708 + $0x98] sm:$0xff] %v358
          %729 = vst [vmem:[%s708 + $0xa0] sm:$0xff] %v359
          %730 = vst [vmem:[%s708 + $0xa8] sm:$0xff] %v360
          %731 = vst [vmem:[%s708 + $0xb0] sm:$0xff] %v361
          %732 = vst [vmem:[%s708 + $0xb8] sm:$0xff] %v362
          %733 = vst [vmem:[%s708 + $0xc0] sm:$0xff] %v363
          %734 = vst [vmem:[%s708 + $0xc8] sm:$0xff] %v364
          %735 = vst [vmem:[%s708 + $0xd0] sm:$0xff] %v365
          %736 = vst [vmem:[%s708 + $0xd8] sm:$0xff] %v366
          %737 = vst [vmem:[%s708 + $0xe0] sm:$0xff] %v367
          %738 = vst [vmem:[%s708 + $0xe8] sm:$0xff] %v368
          %739 = vst [vmem:[%s708 + $0xf0] sm:$0xff] %v369
          %740 = vst [vmem:[%s708 + $0xf8] sm:$0xff] %v370
          %s741 = scalar_lea.vmem %s3, 128
          %v742 = vld [vmem:[%s741] sm:$0xff]
          %v743 = vld [vmem:[%s741 + $0x8] sm:$0xff]
          %v744 = vld [vmem:[%s741 + $0x10] sm:$0xff]
          %v745 = vld [vmem:[%s741 + $0x18] sm:$0xff]
          %v746 = vld [vmem:[%s741 + $0x20] sm:$0xff]
          %v747 = vld [vmem:[%s741 + $0x28] sm:$0xff]
          %v748 = vld [vmem:[%s741 + $0x30] sm:$0xff]
          %v749 = vld [vmem:[%s741 + $0x38] sm:$0xff]
          %v750 = vld [vmem:[%s741 + $0x40] sm:$0xff]
          %v751 = vld [vmem:[%s741 + $0x48] sm:$0xff]
          %v752 = vld [vmem:[%s741 + $0x50] sm:$0xff]
          %v753 = vld [vmem:[%s741 + $0x58] sm:$0xff]
          %v754 = vld [vmem:[%s741 + $0x60] sm:$0xff]
          %v755 = vld [vmem:[%s741 + $0x68] sm:$0xff]
          %v756 = vld [vmem:[%s741 + $0x70] sm:$0xff]
          %v757 = vld [vmem:[%s741 + $0x78] sm:$0xff]
          %758 = vmatprep.subr.mxu0 0.0
          %759 = vmatpush1.msra.mxu0 %v742
          %760 = vmatprep.subr.mxu0 0.0
          %761 = vmatpush1.msra.mxu0 %v743
          %762 = vmatprep.subr.mxu0 0.0
          %763 = vmatpush1.msra.mxu0 %v744
          %764 = vmatprep.subr.mxu0 0.0
          %765 = vmatpush1.msra.mxu0 %v745
          %766 = vmatprep.subr.mxu0 0.0
          %767 = vmatpush1.msra.mxu0 %v746
          %768 = vmatprep.subr.mxu0 0.0
          %769 = vmatpush1.msra.mxu0 %v747
          %770 = vmatprep.subr.mxu0 0.0
          %771 = vmatpush1.msra.mxu0 %v748
          %772 = vmatprep.subr.mxu0 0.0
          %773 = vmatpush1.msra.mxu0 %v749
          %774 = vmatprep.subr.mxu0 0.0
          %775 = vmatpush1.msra.mxu0 %v750
          %776 = vmatprep.subr.mxu0 0.0
          %777 = vmatpush1.msra.mxu0 %v751
          %778 = vmatprep.subr.mxu0 0.0
          %779 = vmatpush1.msra.mxu0 %v752
          %780 = vmatprep.subr.mxu0 0.0
          %781 = vmatpush1.msra.mxu0 %v753
          %782 = vmatprep.subr.mxu0 0.0
          %783 = vmatpush1.msra.mxu0 %v754
          %784 = vmatprep.subr.mxu0 0.0
          %785 = vmatpush1.msra.mxu0 %v755
          %786 = vmatprep.subr.mxu0 0.0
          %787 = vmatpush1.msra.mxu0 %v756
          %788 = vmatprep.subr.mxu0 0.0
          %789 = vmatpush1.msra.mxu0 %v757
          %790 = vmatprep.subr.mxu0 0.0
          %791 = vmatpush1.msra.mxu0 0.0
          %792 = vmatprep.subr.mxu0 0.0
          %793 = vmatpush1.msra.mxu0 0.0
          %794 = vmatprep.subr.mxu0 0.0
          %795 = vmatpush1.msra.mxu0 0.0
          %796 = vmatprep.subr.mxu0 0.0
          %797 = vmatpush1.msra.mxu0 0.0
          %798 = vmatprep.subr.mxu0 0.0
          %799 = vmatpush1.msra.mxu0 0.0
          %800 = vmatprep.subr.mxu0 0.0
          %801 = vmatpush1.msra.mxu0 0.0
          %802 = vmatprep.subr.mxu0 0.0
          %803 = vmatpush1.msra.mxu0 0.0
          %804 = vmatprep.subr.mxu0 0.0
          %805 = vmatpush1.msra.mxu0 0.0
          %806 = vmatprep.subr.mxu0 0.0
          %807 = vmatpush1.msra.mxu0 0.0
          %808 = vmatprep.subr.mxu0 0.0
          %809 = vmatpush1.msra.mxu0 0.0
          %810 = vmatprep.subr.mxu0 0.0
          %811 = vmatpush1.msra.mxu0 0.0
          %812 = vmatprep.subr.mxu0 0.0
          %813 = vmatpush1.msra.mxu0 0.0
          %814 = vmatprep.subr.mxu0 0.0
          %815 = vmatpush1.msra.mxu0 0.0
          %816 = vmatprep.subr.mxu0 0.0
          %817 = vmatpush1.msra.mxu0 0.0
          %818 = vmatprep.subr.mxu0 0.0
          %819 = vmatpush1.msra.mxu0 0.0
          %820 = vmatprep.subr.mxu0 0.0
          %821 = vmatpush1.msra.mxu0 0.0
          %822 = vmatprep.mubr.f32.mxu0 0.0
          %823 = vmatmul.mubr.f32.gmra.mrb[0].mxu0 %v339
          %v824 = vpop.f32.mrb[0].mxu0
          %v825 = vadd.f32 0.0, %v824
          %v826 = vpop.f32.mrb[0].mxu0
          %827 = vmatprep.mubr.f32.mxu0 0.0
          %828 = vmatmul.mubr.f32.gmra.mrb[0].mxu0 %v340
          %v829 = vpop.f32.mrb[0].mxu0
          %v830 = vadd.f32 0.0, %v829
          %v831 = vpop.f32.mrb[0].mxu0
          %832 = vmatprep.mubr.f32.mxu0 0.0
          %833 = vmatmul.mubr.f32.gmra.mrb[0].mxu0 %v341
          %v834 = vpop.f32.mrb[0].mxu0
          %v835 = vadd.f32 0.0, %v834
          %v836 = vpop.f32.mrb[0].mxu0
          %837 = vmatprep.mubr.f32.mxu0 0.0
          %838 = vmatmul.mubr.f32.gmra.mrb[0].mxu0 %v342
          %v839 = vpop.f32.mrb[0].mxu0
          %v840 = vadd.f32 0.0, %v839
          %v841 = vpop.f32.mrb[0].mxu0
          %842 = vmatprep.mubr.f32.mxu0 0.0
          %843 = vmatmul.mubr.f32.gmra.mrb[0].mxu0 %v343
          %v844 = vpop.f32.mrb[0].mxu0
          %v845 = vadd.f32 0.0, %v844
          %v846 = vpop.f32.mrb[0].mxu0
          %847 = vmatprep.mubr.f32.mxu0 0.0
          %848 = vmatmul.mubr.f32.gmra.mrb[0].mxu0 %v344
          %v849 = vpop.f32.mrb[0].mxu0
          %v850 = vadd.f32 0.0, %v849
          %v851 = vpop.f32.mrb[0].mxu0
          %852 = vmatprep.mubr.f32.mxu0 0.0
          %853 = vmatmul.mubr.f32.gmra.mrb[0].mxu0 %v345
          %v854 = vpop.f32.mrb[0].mxu0
          %v855 = vadd.f32 0.0, %v854
          %v856 = vpop.f32.mrb[0].mxu0
          %857 = vmatprep.mubr.f32.mxu0 0.0
          %858 = vmatmul.mubr.f32.gmra.mrb[0].mxu0 %v346
          %v859 = vpop.f32.mrb[0].mxu0
          %v860 = vadd.f32 0.0, %v859
          %v861 = vpop.f32.mrb[0].mxu0
          %862 = vmatprep.mubr.f32.mxu0 0.0
          %863 = vmatmul.mubr.f32.gmra.mrb[0].mxu0 %v347
          %v864 = vpop.f32.mrb[0].mxu0
          %v865 = vadd.f32 0.0, %v864
          %v866 = vpop.f32.mrb[0].mxu0
          %867 = vmatprep.mubr.f32.mxu0 0.0
          %868 = vmatmul.mubr.f32.gmra.mrb[0].mxu0 %v348
          %v869 = vpop.f32.mrb[0].mxu0
          %v870 = vadd.f32 0.0, %v869
          %v871 = vpop.f32.mrb[0].mxu0
          %872 = vmatprep.mubr.f32.mxu0 0.0
          %873 = vmatmul.mubr.f32.gmra.mrb[0].mxu0 %v349
          %v874 = vpop.f32.mrb[0].mxu0
          %v875 = vadd.f32 0.0, %v874
          %v876 = vpop.f32.mrb[0].mxu0
          %877 = vmatprep.mubr.f32.mxu0 0.0
          %878 = vmatmul.mubr.f32.gmra.mrb[0].mxu0 %v350
          %v879 = vpop.f32.mrb[0].mxu0
          %v880 = vadd.f32 0.0, %v879
          %v881 = vpop.f32.mrb[0].mxu0
          %882 = vmatprep.mubr.f32.mxu0 0.0
          %883 = vmatmul.mubr.f32.gmra.mrb[0].mxu0 %v351
          %v884 = vpop.f32.mrb[0].mxu0
          %v885 = vadd.f32 0.0, %v884
          %v886 = vpop.f32.mrb[0].mxu0
          %887 = vmatprep.mubr.f32.mxu0 0.0
          %888 = vmatmul.mubr.f32.gmra.mrb[0].mxu0 %v352
          %v889 = vpop.f32.mrb[0].mxu0
          %v890 = vadd.f32 0.0, %v889
          %v891 = vpop.f32.mrb[0].mxu0
          %892 = vmatprep.mubr.f32.mxu0 0.0
          %893 = vmatmul.mubr.f32.gmra.mrb[0].mxu0 %v353
          %v894 = vpop.f32.mrb[0].mxu0
          %v895 = vadd.f32 0.0, %v894
          %v896 = vpop.f32.mrb[0].mxu0
          %897 = vmatprep.mubr.f32.mxu0 0.0
          %898 = vmatmul.mubr.f32.gmra.mrb[0].mxu0 %v354
          %v899 = vpop.f32.mrb[0].mxu0
          %v900 = vadd.f32 0.0, %v899
          %v901 = vpop.f32.mrb[0].mxu0
          %902 = vmatprep.mubr.f32.mxu0 0.0
          %903 = vmatmul.mubr.f32.gmra.mrb[0].mxu0 %v355
          %v904 = vpop.f32.mrb[0].mxu0
          %v905 = vadd.f32 0.0, %v904
          %v906 = vpop.f32.mrb[0].mxu0
          %907 = vmatprep.mubr.f32.mxu0 0.0
          %908 = vmatmul.mubr.f32.gmra.mrb[0].mxu0 %v356
          %v909 = vpop.f32.mrb[0].mxu0
          %v910 = vadd.f32 0.0, %v909
          %v911 = vpop.f32.mrb[0].mxu0
          %912 = vmatprep.mubr.f32.mxu0 0.0
          %913 = vmatmul.mubr.f32.gmra.mrb[0].mxu0 %v357
          %v914 = vpop.f32.mrb[0].mxu0
          %v915 = vadd.f32 0.0, %v914
          %v916 = vpop.f32.mrb[0].mxu0
          %917 = vmatprep.mubr.f32.mxu0 0.0
          %918 = vmatmul.mubr.f32.gmra.mrb[0].mxu0 %v358
          %v919 = vpop.f32.mrb[0].mxu0
          %v920 = vadd.f32 0.0, %v919
          %v921 = vpop.f32.mrb[0].mxu0
          %922 = vmatprep.mubr.f32.mxu0 0.0
          %923 = vmatmul.mubr.f32.gmra.mrb[0].mxu0 %v359
          %v924 = vpop.f32.mrb[0].mxu0
          %v925 = vadd.f32 0.0, %v924
          %v926 = vpop.f32.mrb[0].mxu0
          %927 = vmatprep.mubr.f32.mxu0 0.0
          %928 = vmatmul.mubr.f32.gmra.mrb[0].mxu0 %v360
          %v929 = vpop.f32.mrb[0].mxu0
          %v930 = vadd.f32 0.0, %v929
          %v931 = vpop.f32.mrb[0].mxu0
          %932 = vmatprep.mubr.f32.mxu0 0.0
          %933 = vmatmul.mubr.f32.gmra.mrb[0].mxu0 %v361
          %v934 = vpop.f32.mrb[0].mxu0
          %v935 = vadd.f32 0.0, %v934
          %v936 = vpop.f32.mrb[0].mxu0
          %937 = vmatprep.mubr.f32.mxu0 0.0
          %938 = vmatmul.mubr.f32.gmra.mrb[0].mxu0 %v362
          %v939 = vpop.f32.mrb[0].mxu0
          %v940 = vadd.f32 0.0, %v939
          %v941 = vpop.f32.mrb[0].mxu0
          %942 = vmatprep.mubr.f32.mxu0 0.0
          %943 = vmatmul.mubr.f32.gmra.mrb[0].mxu0 %v363
          %v944 = vpop.f32.mrb[0].mxu0
          %v945 = vadd.f32 0.0, %v944
          %v946 = vpop.f32.mrb[0].mxu0
          %947 = vmatprep.mubr.f32.mxu0 0.0
          %948 = vmatmul.mubr.f32.gmra.mrb[0].mxu0 %v364
          %v949 = vpop.f32.mrb[0].mxu0
          %v950 = vadd.f32 0.0, %v949
          %v951 = vpop.f32.mrb[0].mxu0
          %952 = vmatprep.mubr.f32.mxu0 0.0
          %953 = vmatmul.mubr.f32.gmra.mrb[0].mxu0 %v365
          %v954 = vpop.f32.mrb[0].mxu0
          %v955 = vadd.f32 0.0, %v954
          %v956 = vpop.f32.mrb[0].mxu0
          %957 = vmatprep.mubr.f32.mxu0 0.0
          %958 = vmatmul.mubr.f32.gmra.mrb[0].mxu0 %v366
          %v959 = vpop.f32.mrb[0].mxu0
          %v960 = vadd.f32 0.0, %v959
          %v961 = vpop.f32.mrb[0].mxu0
          %962 = vmatprep.mubr.f32.mxu0 0.0
          %963 = vmatmul.mubr.f32.gmra.mrb[0].mxu0 %v367
          %v964 = vpop.f32.mrb[0].mxu0
          %v965 = vadd.f32 0.0, %v964
          %v966 = vpop.f32.mrb[0].mxu0
          %967 = vmatprep.mubr.f32.mxu0 0.0
          %968 = vmatmul.mubr.f32.gmra.mrb[0].mxu0 %v368
          %v969 = vpop.f32.mrb[0].mxu0
          %v970 = vadd.f32 0.0, %v969
          %v971 = vpop.f32.mrb[0].mxu0
          %972 = vmatprep.mubr.f32.mxu0 0.0
          %973 = vmatmul.mubr.f32.gmra.mrb[0].mxu0 %v369
          %v974 = vpop.f32.mrb[0].mxu0
          %v975 = vadd.f32 0.0, %v974
          %v976 = vpop.f32.mrb[0].mxu0
          %977 = vmatprep.mubr.f32.mxu0 0.0
          %978 = vmatmul.mubr.f32.gmra.mrb[0].mxu0 %v370
          %v979 = vpop.f32.mrb[0].mxu0
          %v980 = vadd.f32 0.0, %v979
          %v981 = vpop.f32.mrb[0].mxu0
          %982 = vdwg.mxu0
          %v983 = vmul.f32 %v825, 2.0
          %v984 = vmul.f32 %v830, 2.0
          %v985 = vmul.f32 %v835, 2.0
          %v986 = vmul.f32 %v840, 2.0
          %v987 = vmul.f32 %v845, 2.0
          %v988 = vmul.f32 %v850, 2.0
          %v989 = vmul.f32 %v855, 2.0
          %v990 = vmul.f32 %v860, 2.0
          %v991 = vmul.f32 %v865, 2.0
          %v992 = vmul.f32 %v870, 2.0
          %v993 = vmul.f32 %v875, 2.0
          %v994 = vmul.f32 %v880, 2.0
          %v995 = vmul.f32 %v885, 2.0
          %v996 = vmul.f32 %v890, 2.0
          %v997 = vmul.f32 %v895, 2.0
          %v998 = vmul.f32 %v900, 2.0
          %v999 = vmul.f32 %v905, 2.0
          %v1000 = vmul.f32 %v910, 2.0
          %v1001 = vmul.f32 %v915, 2.0
          %v1002 = vmul.f32 %v920, 2.0
          %v1003 = vmul.f32 %v925, 2.0
          %v1004 = vmul.f32 %v930, 2.0
          %v1005 = vmul.f32 %v935, 2.0
          %v1006 = vmul.f32 %v940, 2.0
          %v1007 = vmul.f32 %v945, 2.0
          %v1008 = vmul.f32 %v950, 2.0
          %v1009 = vmul.f32 %v955, 2.0
          %v1010 = vmul.f32 %v960, 2.0
          %v1011 = vmul.f32 %v965, 2.0
          %v1012 = vmul.f32 %v970, 2.0
          %v1013 = vmul.f32 %v975, 2.0
          %v1014 = vmul.f32 %v980, 2.0
          %s1015 = scalar_lea.vmem [#allocation4], 256
          %1016 = vst [vmem:[%s1015] sm:$0xff] %v983
          %1017 = vst [vmem:[%s1015 + $0x8] sm:$0xff] %v984
          %1018 = vst [vmem:[%s1015 + $0x10] sm:$0xff] %v985
          %1019 = vst [vmem:[%s1015 + $0x18] sm:$0xff] %v986
          %1020 = vst [vmem:[%s1015 + $0x20] sm:$0xff] %v987
          %1021 = vst [vmem:[%s1015 + $0x28] sm:$0xff] %v988
          %1022 = vst [vmem:[%s1015 + $0x30] sm:$0xff] %v989
          %1023 = vst [vmem:[%s1015 + $0x38] sm:$0xff] %v990
          %1024 = vst [vmem:[%s1015 + $0x40] sm:$0xff] %v991
          %1025 = vst [vmem:[%s1015 + $0x48] sm:$0xff] %v992
          %1026 = vst [vmem:[%s1015 + $0x50] sm:$0xff] %v993
          %1027 = vst [vmem:[%s1015 + $0x58] sm:$0xff] %v994
          %1028 = vst [vmem:[%s1015 + $0x60] sm:$0xff] %v995
          %1029 = vst [vmem:[%s1015 + $0x68] sm:$0xff] %v996
          %1030 = vst [vmem:[%s1015 + $0x70] sm:$0xff] %v997
          %1031 = vst [vmem:[%s1015 + $0x78] sm:$0xff] %v998
          %1032 = vst [vmem:[%s1015 + $0x80] sm:$0xff] %v999
          %1033 = vst [vmem:[%s1015 + $0x88] sm:$0xff] %v1000
          %1034 = vst [vmem:[%s1015 + $0x90] sm:$0xff] %v1001
          %1035 = vst [vmem:[%s1015 + $0x98] sm:$0xff] %v1002
          %1036 = vst [vmem:[%s1015 + $0xa0] sm:$0xff] %v1003
          %1037 = vst [vmem:[%s1015 + $0xa8] sm:$0xff] %v1004
          %1038 = vst [vmem:[%s1015 + $0xb0] sm:$0xff] %v1005
          %1039 = vst [vmem:[%s1015 + $0xb8] sm:$0xff] %v1006
          %1040 = vst [vmem:[%s1015 + $0xc0] sm:$0xff] %v1007
          %1041 = vst [vmem:[%s1015 + $0xc8] sm:$0xff] %v1008
          %1042 = vst [vmem:[%s1015 + $0xd0] sm:$0xff] %v1009
          %1043 = vst [vmem:[%s1015 + $0xd8] sm:$0xff] %v1010
          %1044 = vst [vmem:[%s1015 + $0xe0] sm:$0xff] %v1011
          %1045 = vst [vmem:[%s1015 + $0xe8] sm:$0xff] %v1012
          %1046 = vst [vmem:[%s1015 + $0xf0] sm:$0xff] %v1013
          %1047 = vst [vmem:[%s1015 + $0xf8] sm:$0xff] %v1014
        $region85: #{arma_forward.1} parent=76 // pred_fallthru
          _
        %v1048 = vld [vmem:[%s283] sm:$0xf]
        %v1049 = vld [vmem:[%s283 + $0x4] sm:$0xf]
        %v1050 = vld [vmem:[%s283 + $0x8] sm:$0xf]
        %v1051 = vld [vmem:[%s283 + $0xc] sm:$0xf]
        %v1052 = vld [vmem:[%s283 + $0x10] sm:$0xf]
        %v1053 = vld [vmem:[%s283 + $0x14] sm:$0xf]
        %v1054 = vld [vmem:[%s283 + $0x18] sm:$0xf]
        %v1055 = vld [vmem:[%s283 + $0x1c] sm:$0xf]
        %s1056 = smul.u32 %s23, 128
        %s1057 = smul.u32 %s316, 512
        %s1058 = sadd.s32 %s1056, %s1057
        %s1059 = scalar_lea.vmem [#allocation2], %s1058
        %v1060 = vld [vmem:[%s1059] sm:$0xff]
        %v1061 = vld [vmem:[%s1059 + $0x8] sm:$0xff]
        %v1062 = vld [vmem:[%s1059 + $0x10] sm:$0xff]
        %v1063 = vld [vmem:[%s1059 + $0x18] sm:$0xff]
        %v1064 = vld [vmem:[%s1059 + $0x20] sm:$0xff]
        %v1065 = vld [vmem:[%s1059 + $0x28] sm:$0xff]
        %v1066 = vld [vmem:[%s1059 + $0x30] sm:$0xff]
        %v1067 = vld [vmem:[%s1059 + $0x38] sm:$0xff]
        %v1068 = vld [vmem:[%s1059 + $0x40] sm:$0xff]
        %v1069 = vld [vmem:[%s1059 + $0x48] sm:$0xff]
        %v1070 = vld [vmem:[%s1059 + $0x50] sm:$0xff]
        %v1071 = vld [vmem:[%s1059 + $0x58] sm:$0xff]
        %v1072 = vld [vmem:[%s1059 + $0x60] sm:$0xff]
        %v1073 = vld [vmem:[%s1059 + $0x68] sm:$0xff]
        %v1074 = vld [vmem:[%s1059 + $0x70] sm:$0xff]
        %v1075 = vld [vmem:[%s1059 + $0x78] sm:$0xff]
        %v1076 = vpack.c.bf16 %v1061, %v1060
        %v1077 = vpack.c.bf16 %v1063, %v1062
        %v1078 = vpack.c.bf16 %v1065, %v1064
        %v1079 = vpack.c.bf16 %v1067, %v1066
        %v1080 = vpack.c.bf16 %v1069, %v1068
        %v1081 = vpack.c.bf16 %v1071, %v1070
        %v1082 = vpack.c.bf16 %v1073, %v1072
        %v1083 = vpack.c.bf16 %v1075, %v1074
        %v1092 = vunpack.c.l.b16 %v1048
        %v1093 = vunpack.c.l.b16 %v1049
        %v1094 = vunpack.c.l.b16 %v1050
        %v1095 = vunpack.c.l.b16 %v1051
        %v1096 = vunpack.c.l.b16 %v1052
        %v1097 = vunpack.c.l.b16 %v1053
        %v1098 = vunpack.c.l.b16 %v1054
        %v1099 = vunpack.c.l.b16 %v1055
        %v1100 = vpack.c.b16 %v1093, %v1092
        %v1101 = vpack.c.b16 %v1095, %v1094
        %v1102 = vpack.c.b16 %v1097, %v1096
        %v1103 = vpack.c.b16 %v1099, %v1098
        %1108 = vmatprep.subr.bf16.mxu0 0
        %1109 = vmatpush1.bf16.msra.mxu0 %v1076
        %1110 = vmatprep.subr.bf16.mxu0 0
        %1111 = vmatpush1.bf16.msra.mxu0 %v1077
        %1112 = vmatprep.subr.bf16.mxu0 0
        %1113 = vmatpush1.bf16.msra.mxu0 %v1078
        %1114 = vmatprep.subr.bf16.mxu0 0
        %1115 = vmatpush1.bf16.msra.mxu0 %v1079
        %1116 = vmatprep.subr.bf16.mxu0 0
        %1117 = vmatpush1.bf16.msra.mxu0 %v1080
        %1118 = vmatprep.subr.bf16.mxu0 0
        %1119 = vmatpush1.bf16.msra.mxu0 %v1081
        %1120 = vmatprep.subr.bf16.mxu0 0
        %1121 = vmatpush1.bf16.msra.mxu0 %v1082
        %1122 = vmatprep.subr.bf16.mxu0 0
        %1123 = vmatpush1.bf16.msra.mxu0 %v1083
        %1124 = vmatprep.subr.bf16.mxu0 0
        %1125 = vmatpush1.bf16.msra.mxu0 0
        %1126 = vmatprep.subr.bf16.mxu0 0
        %1127 = vmatpush1.bf16.msra.mxu0 0
        %1128 = vmatprep.subr.bf16.mxu0 0
        %1129 = vmatpush1.bf16.msra.mxu0 0
        %1130 = vmatprep.subr.bf16.mxu0 0
        %1131 = vmatpush1.bf16.msra.mxu0 0
        %1132 = vmatprep.subr.bf16.mxu0 0
        %1133 = vmatpush1.bf16.msra.mxu0 0
        %1134 = vmatprep.subr.bf16.mxu0 0
        %1135 = vmatpush1.bf16.msra.mxu0 0
        %1136 = vmatprep.subr.bf16.mxu0 0
        %1137 = vmatpush1.bf16.msra.mxu0 0
        %1138 = vmatprep.subr.bf16.mxu0 0
        %1139 = vmatpush1.bf16.msra.mxu0 0
        %1140 = vmatprep.mubr.bf16.mxu0 0
        %1141 = vmatmul.mubr.bf16.gmra.mrb[0].mxu0 %v1100
        %v1142 = vpop.f32.mrb[0].mxu0
        %v1143 = vadd.f32 0.0, %v1142
        %v1144 = vpop.f32.mrb[0].mxu0
        %v1145 = vpop.f32.mrb[0].mxu0
        %v1146 = vadd.f32 0.0, %v1145
        %v1147 = vpop.f32.mrb[0].mxu0
        %1148 = vmatprep.mubr.bf16.mxu0 0
        %1149 = vmatmul.mubr.bf16.gmra.mrb[0].mxu0 %v1101
        %v1150 = vpop.f32.mrb[0].mxu0
        %v1151 = vadd.f32 0.0, %v1150
        %v1152 = vpop.f32.mrb[0].mxu0
        %v1153 = vpop.f32.mrb[0].mxu0
        %v1154 = vadd.f32 0.0, %v1153
        %v1155 = vpop.f32.mrb[0].mxu0
        %1156 = vmatprep.mubr.bf16.mxu0 0
        %1157 = vmatmul.mubr.bf16.gmra.mrb[0].mxu0 %v1102
        %v1158 = vpop.f32.mrb[0].mxu0
        %v1159 = vadd.f32 0.0, %v1158
        %v1160 = vpop.f32.mrb[0].mxu0
        %v1161 = vpop.f32.mrb[0].mxu0
        %v1162 = vadd.f32 0.0, %v1161
        %v1163 = vpop.f32.mrb[0].mxu0
        %1164 = vmatprep.mubr.bf16.mxu0 0
        %1165 = vmatmul.mubr.bf16.gmra.mrb[0].mxu0 %v1103
        %v1166 = vpop.f32.mrb[0].mxu0
        %v1167 = vadd.f32 0.0, %v1166
        %v1168 = vpop.f32.mrb[0].mxu0
        %v1169 = vpop.f32.mrb[0].mxu0
        %v1170 = vadd.f32 0.0, %v1169
        %v1171 = vpop.f32.mrb[0].mxu0
        %1172 = vdwg.mxu0
        // Predicated region
        $region86: #{arma_forward.1} parent=76 // pred_check
          %p1173 = pneg %p334
        $region87: #{arma_forward.1} parent=76 // pred_check_branch
          %1175 = sbr.rel (%p1173) target = $region89
        $region88: #{arma_forward.1} parent=76 // pred_region
          %1176 = vst [vmem:[#allocation3] sm:$0xff] %v1143
          %1177 = vst [vmem:[#allocation3 + $0x8] sm:$0xff] %v1146
          %1178 = vst [vmem:[#allocation3 + $0x10] sm:$0xff] %v1151
          %1179 = vst [vmem:[#allocation3 + $0x18] sm:$0xff] %v1154
          %1180 = vst [vmem:[#allocation3 + $0x20] sm:$0xff] %v1159
          %1181 = vst [vmem:[#allocation3 + $0x28] sm:$0xff] %v1162
          %1182 = vst [vmem:[#allocation3 + $0x30] sm:$0xff] %v1167
          %1183 = vst [vmem:[#allocation3 + $0x38] sm:$0xff] %v1170
        $region89: #{arma_forward.1} parent=76 // pred_fallthru
          _
        %p1184 = scmp.ne.s32.totalorder %s23, 0
        // Predicated region
        $region90: #{arma_forward.1} parent=76 // pred_check
          %p1185 = pneg %p1184
        $region91: #{arma_forward.1} parent=76 // pred_check_branch
          %1187 = sbr.rel (%p1185) target = $region93
        $region92: #{arma_forward.1} parent=76 // pred_region
          %v1188 = vld [vmem:[#allocation3] sm:$0xff]
          %v1189 = vld [vmem:[#allocation3 + $0x8] sm:$0xff]
          %v1190 = vld [vmem:[#allocation3 + $0x10] sm:$0xff]
          %v1191 = vld [vmem:[#allocation3 + $0x18] sm:$0xff]
          %v1192 = vld [vmem:[#allocation3 + $0x20] sm:$0xff]
          %v1193 = vld [vmem:[#allocation3 + $0x28] sm:$0xff]
          %v1194 = vld [vmem:[#allocation3 + $0x30] sm:$0xff]
          %v1195 = vld [vmem:[#allocation3 + $0x38] sm:$0xff]
          %v1196 = vadd.f32 %v1188, %v1143
          %v1197 = vadd.f32 %v1189, %v1146
          %v1198 = vadd.f32 %v1190, %v1151
          %v1199 = vadd.f32 %v1191, %v1154
          %v1200 = vadd.f32 %v1192, %v1159
          %v1201 = vadd.f32 %v1193, %v1162
          %v1202 = vadd.f32 %v1194, %v1167
          %v1203 = vadd.f32 %v1195, %v1170
          %1204 = vst [vmem:[#allocation3] sm:$0xff] %v1196
          %1205 = vst [vmem:[#allocation3 + $0x8] sm:$0xff] %v1197
          %1206 = vst [vmem:[#allocation3 + $0x10] sm:$0xff] %v1198
          %1207 = vst [vmem:[#allocation3 + $0x18] sm:$0xff] %v1199
          %1208 = vst [vmem:[#allocation3 + $0x20] sm:$0xff] %v1200
          %1209 = vst [vmem:[#allocation3 + $0x28] sm:$0xff] %v1201
          %1210 = vst [vmem:[#allocation3 + $0x30] sm:$0xff] %v1202
          %1211 = vst [vmem:[#allocation3 + $0x38] sm:$0xff] %v1203
        $region93: #{arma_forward.1} parent=76 // pred_fallthru
          _
        %s1212 = sadd.s32 %s1056, 256
        %s1213 = sadd.s32 %s1212, %s1057
        %s1214 = scalar_lea.vmem [#allocation2], %s1213
        %v1215 = vld [vmem:[%s1214] sm:$0xff]
        %v1216 = vld [vmem:[%s1214 + $0x8] sm:$0xff]
        %v1217 = vld [vmem:[%s1214 + $0x10] sm:$0xff]
        %v1218 = vld [vmem:[%s1214 + $0x18] sm:$0xff]
        %v1219 = vld [vmem:[%s1214 + $0x20] sm:$0xff]
        %v1220 = vld [vmem:[%s1214 + $0x28] sm:$0xff]
        %v1221 = vld [vmem:[%s1214 + $0x30] sm:$0xff]
        %v1222 = vld [vmem:[%s1214 + $0x38] sm:$0xff]
        %v1223 = vld [vmem:[%s1214 + $0x40] sm:$0xff]
        %v1224 = vld [vmem:[%s1214 + $0x48] sm:$0xff]
        %v1225 = vld [vmem:[%s1214 + $0x50] sm:$0xff]
        %v1226 = vld [vmem:[%s1214 + $0x58] sm:$0xff]
        %v1227 = vld [vmem:[%s1214 + $0x60] sm:$0xff]
        %v1228 = vld [vmem:[%s1214 + $0x68] sm:$0xff]
        %v1229 = vld [vmem:[%s1214 + $0x70] sm:$0xff]
        %v1230 = vld [vmem:[%s1214 + $0x78] sm:$0xff]
        %v1231 = vpack.c.bf16 %v1216, %v1215
        %v1232 = vpack.c.bf16 %v1218, %v1217
        %v1233 = vpack.c.bf16 %v1220, %v1219
        %v1234 = vpack.c.bf16 %v1222, %v1221
        %v1235 = vpack.c.bf16 %v1224, %v1223
        %v1236 = vpack.c.bf16 %v1226, %v1225
        %v1237 = vpack.c.bf16 %v1228, %v1227
        %v1238 = vpack.c.bf16 %v1230, %v1229
        %1239 = vmatprep.subr.bf16.mxu0 0
        %1240 = vmatpush1.bf16.msra.mxu0 %v1231
        %1241 = vmatprep.subr.bf16.mxu0 0
        %1242 = vmatpush1.bf16.msra.mxu0 %v1232
        %1243 = vmatprep.subr.bf16.mxu0 0
        %1244 = vmatpush1.bf16.msra.mxu0 %v1233
        %1245 = vmatprep.subr.bf16.mxu0 0
        %1246 = vmatpush1.bf16.msra.mxu0 %v1234
        %1247 = vmatprep.subr.bf16.mxu0 0
        %1248 = vmatpush1.bf16.msra.mxu0 %v1235
        %1249 = vmatprep.subr.bf16.mxu0 0
        %1250 = vmatpush1.bf16.msra.mxu0 %v1236
        %1251 = vmatprep.subr.bf16.mxu0 0
        %1252 = vmatpush1.bf16.msra.mxu0 %v1237
        %1253 = vmatprep.subr.bf16.mxu0 0
        %1254 = vmatpush1.bf16.msra.mxu0 %v1238
        %1255 = vmatprep.subr.bf16.mxu0 0
        %1256 = vmatpush1.bf16.msra.mxu0 0
        %1257 = vmatprep.subr.bf16.mxu0 0
        %1258 = vmatpush1.bf16.msra.mxu0 0
        %1259 = vmatprep.subr.bf16.mxu0 0
        %1260 = vmatpush1.bf16.msra.mxu0 0
        %1261 = vmatprep.subr.bf16.mxu0 0
        %1262 = vmatpush1.bf16.msra.mxu0 0
        %1263 = vmatprep.subr.bf16.mxu0 0
        %1264 = vmatpush1.bf16.msra.mxu0 0
        %1265 = vmatprep.subr.bf16.mxu0 0
        %1266 = vmatpush1.bf16.msra.mxu0 0
        %1267 = vmatprep.subr.bf16.mxu0 0
        %1268 = vmatpush1.bf16.msra.mxu0 0
        %1269 = vmatprep.subr.bf16.mxu0 0
        %1270 = vmatpush1.bf16.msra.mxu0 0
        %1271 = vmatprep.mubr.bf16.mxu0 0
        %1272 = vmatmul.mubr.bf16.gmra.mrb[0].mxu0 %v1100
        %v1273 = vpop.f32.mrb[0].mxu0
        %v1274 = vadd.f32 0.0, %v1273
        %v1275 = vpop.f32.mrb[0].mxu0
        %v1276 = vpop.f32.mrb[0].mxu0
        %v1277 = vadd.f32 0.0, %v1276
        %v1278 = vpop.f32.mrb[0].mxu0
        %1279 = vmatprep.mubr.bf16.mxu0 0
        %1280 = vmatmul.mubr.bf16.gmra.mrb[0].mxu0 %v1101
        %v1281 = vpop.f32.mrb[0].mxu0
        %v1282 = vadd.f32 0.0, %v1281
        %v1283 = vpop.f32.mrb[0].mxu0
        %v1284 = vpop.f32.mrb[0].mxu0
        %v1285 = vadd.f32 0.0, %v1284
        %v1286 = vpop.f32.mrb[0].mxu0
        %1287 = vmatprep.mubr.bf16.mxu0 0
        %1288 = vmatmul.mubr.bf16.gmra.mrb[0].mxu0 %v1102
        %v1289 = vpop.f32.mrb[0].mxu0
        %v1290 = vadd.f32 0.0, %v1289
        %v1291 = vpop.f32.mrb[0].mxu0
        %v1292 = vpop.f32.mrb[0].mxu0
        %v1293 = vadd.f32 0.0, %v1292
        %v1294 = vpop.f32.mrb[0].mxu0
        %1295 = vmatprep.mubr.bf16.mxu0 0
        %1296 = vmatmul.mubr.bf16.gmra.mrb[0].mxu0 %v1103
        %v1297 = vpop.f32.mrb[0].mxu0
        %v1298 = vadd.f32 0.0, %v1297
        %v1299 = vpop.f32.mrb[0].mxu0
        %v1300 = vpop.f32.mrb[0].mxu0
        %v1301 = vadd.f32 0.0, %v1300
        %v1302 = vpop.f32.mrb[0].mxu0
        %1303 = vdwg.mxu0
        // Predicated region
        $region94: #{arma_forward.1} parent=76 // pred_check
          %p1304 = pneg %p334
        $region95: #{arma_forward.1} parent=76 // pred_check_branch
          %1306 = sbr.rel (%p1304) target = $region97
        $region96: #{arma_forward.1} parent=76 // pred_region
          %s1307 = scalar_lea.vmem [#allocation3], 64
          %1308 = vst [vmem:[%s1307] sm:$0xff] %v1274
          %1309 = vst [vmem:[%s1307 + $0x8] sm:$0xff] %v1277
          %1310 = vst [vmem:[%s1307 + $0x10] sm:$0xff] %v1282
          %1311 = vst [vmem:[%s1307 + $0x18] sm:$0xff] %v1285
          %1312 = vst [vmem:[%s1307 + $0x20] sm:$0xff] %v1290
          %1313 = vst [vmem:[%s1307 + $0x28] sm:$0xff] %v1293
          %1314 = vst [vmem:[%s1307 + $0x30] sm:$0xff] %v1298
          %1315 = vst [vmem:[%s1307 + $0x38] sm:$0xff] %v1301
        $region97: #{arma_forward.1} parent=76 // pred_fallthru
          _
        // Predicated region
        $region98: #{arma_forward.1} parent=76 // pred_check
          %p1316 = pneg %p1184
        $region99: #{arma_forward.1} parent=76 // pred_check_branch
          %1318 = sbr.rel (%p1316) target = $region101
        $region100: #{arma_forward.1} parent=76 // pred_region
          %s1319 = scalar_lea.vmem [#allocation3], 64
          %v1320 = vld [vmem:[%s1319] sm:$0xff]
          %v1321 = vld [vmem:[%s1319 + $0x8] sm:$0xff]
          %v1322 = vld [vmem:[%s1319 + $0x10] sm:$0xff]
          %v1323 = vld [vmem:[%s1319 + $0x18] sm:$0xff]
          %v1324 = vld [vmem:[%s1319 + $0x20] sm:$0xff]
          %v1325 = vld [vmem:[%s1319 + $0x28] sm:$0xff]
          %v1326 = vld [vmem:[%s1319 + $0x30] sm:$0xff]
          %v1327 = vld [vmem:[%s1319 + $0x38] sm:$0xff]
          %v1328 = vadd.f32 %v1320, %v1274
          %v1329 = vadd.f32 %v1321, %v1277
          %v1330 = vadd.f32 %v1322, %v1282
          %v1331 = vadd.f32 %v1323, %v1285
          %v1332 = vadd.f32 %v1324, %v1290
          %v1333 = vadd.f32 %v1325, %v1293
          %v1334 = vadd.f32 %v1326, %v1298
          %v1335 = vadd.f32 %v1327, %v1301
          %1336 = vst [vmem:[%s1319] sm:$0xff] %v1328
          %1337 = vst [vmem:[%s1319 + $0x8] sm:$0xff] %v1329
          %1338 = vst [vmem:[%s1319 + $0x10] sm:$0xff] %v1330
          %1339 = vst [vmem:[%s1319 + $0x18] sm:$0xff] %v1331
          %1340 = vst [vmem:[%s1319 + $0x20] sm:$0xff] %v1332
          %1341 = vst [vmem:[%s1319 + $0x28] sm:$0xff] %v1333
          %1342 = vst [vmem:[%s1319 + $0x30] sm:$0xff] %v1334
          %1343 = vst [vmem:[%s1319 + $0x38] sm:$0xff] %v1335
        $region101: #{arma_forward.1} parent=76 // pred_fallthru
          _
        %p1344 = scmp.eq.s32.totalorder %s23, 1
        // Predicated region
        $region102: #{arma_forward.1} parent=76 // pred_check
          %p1345 = pneg %p1344
        $region103: #{arma_forward.1} parent=76 // pred_check_branch
          %1347 = sbr.rel (%p1345) target = $region105
        $region104: #{arma_forward.1} parent=76 // pred_region
          %s1348 = smul.u32 %s22, 64
          %s1349 = smul.u32 %s21, 128
          %s1350 = scalar_lea.vmem %s2, %s1349
          %v1351 = vld [vmem:[%s1350] sm:$0xff]
          %v1352 = vld [vmem:[%s1350 + $0x8] sm:$0xff]
          %v1353 = vld [vmem:[%s1350 + $0x10] sm:$0xff]
          %v1354 = vld [vmem:[%s1350 + $0x18] sm:$0xff]
          %v1355 = vld [vmem:[%s1350 + $0x20] sm:$0xff]
          %v1356 = vld [vmem:[%s1350 + $0x28] sm:$0xff]
          %v1357 = vld [vmem:[%s1350 + $0x30] sm:$0xff]
          %v1358 = vld [vmem:[%s1350 + $0x38] sm:$0xff]
          %v1359 = vld [vmem:[%s1350 + $0x40] sm:$0xff]
          %v1360 = vld [vmem:[%s1350 + $0x48] sm:$0xff]
          %v1361 = vld [vmem:[%s1350 + $0x50] sm:$0xff]
          %v1362 = vld [vmem:[%s1350 + $0x58] sm:$0xff]
          %v1363 = vld [vmem:[%s1350 + $0x60] sm:$0xff]
          %v1364 = vld [vmem:[%s1350 + $0x68] sm:$0xff]
          %v1365 = vld [vmem:[%s1350 + $0x70] sm:$0xff]
          %v1366 = vld [vmem:[%s1350 + $0x78] sm:$0xff]
          %v1367 = vld [vmem:[#allocation3] sm:$0xff]
          %v1368 = vld [vmem:[#allocation3 + $0x8] sm:$0xff]
          %v1369 = vld [vmem:[#allocation3 + $0x10] sm:$0xff]
          %v1370 = vld [vmem:[#allocation3 + $0x18] sm:$0xff]
          %v1371 = vld [vmem:[#allocation3 + $0x20] sm:$0xff]
          %v1372 = vld [vmem:[#allocation3 + $0x28] sm:$0xff]
          %v1373 = vld [vmem:[#allocation3 + $0x30] sm:$0xff]
          %v1374 = vld [vmem:[#allocation3 + $0x38] sm:$0xff]
          %s1375 = scalar_lea.vmem [#allocation4], %s1348
          %v1376 = vld [vmem:[%s1375] sm:$0xff]
          %v1377 = vld [vmem:[%s1375 + $0x8] sm:$0xff]
          %v1378 = vld [vmem:[%s1375 + $0x10] sm:$0xff]
          %v1379 = vld [vmem:[%s1375 + $0x18] sm:$0xff]
          %v1380 = vld [vmem:[%s1375 + $0x20] sm:$0xff]
          %v1381 = vld [vmem:[%s1375 + $0x28] sm:$0xff]
          %v1382 = vld [vmem:[%s1375 + $0x30] sm:$0xff]
          %v1383 = vld [vmem:[%s1375 + $0x38] sm:$0xff]
          %1384 = vmatprep.subr.mxu0 0.0
          %1385 = vmatpush1.msra.mxu0 %v1351
          %1386 = vmatprep.subr.mxu0 0.0
          %1387 = vmatpush1.msra.mxu0 %v1352
          %1388 = vmatprep.subr.mxu0 0.0
          %1389 = vmatpush1.msra.mxu0 %v1353
          %1390 = vmatprep.subr.mxu0 0.0
          %1391 = vmatpush1.msra.mxu0 %v1354
          %1392 = vmatprep.subr.mxu0 0.0
          %1393 = vmatpush1.msra.mxu0 %v1355
          %1394 = vmatprep.subr.mxu0 0.0
          %1395 = vmatpush1.msra.mxu0 %v1356
          %1396 = vmatprep.subr.mxu0 0.0
          %1397 = vmatpush1.msra.mxu0 %v1357
          %1398 = vmatprep.subr.mxu0 0.0
          %1399 = vmatpush1.msra.mxu0 %v1358
          %1400 = vmatprep.subr.mxu0 0.0
          %1401 = vmatpush1.msra.mxu0 %v1359
          %1402 = vmatprep.subr.mxu0 0.0
          %1403 = vmatpush1.msra.mxu0 %v1360
          %1404 = vmatprep.subr.mxu0 0.0
          %1405 = vmatpush1.msra.mxu0 %v1361
          %1406 = vmatprep.subr.mxu0 0.0
          %1407 = vmatpush1.msra.mxu0 %v1362
          %1408 = vmatprep.subr.mxu0 0.0
          %1409 = vmatpush1.msra.mxu0 %v1363
          %1410 = vmatprep.subr.mxu0 0.0
          %1411 = vmatpush1.msra.mxu0 %v1364
          %1412 = vmatprep.subr.mxu0 0.0
          %1413 = vmatpush1.msra.mxu0 %v1365
          %1414 = vmatprep.subr.mxu0 0.0
          %1415 = vmatpush1.msra.mxu0 %v1366
          %1416 = vmatprep.subr.mxu0 0.0
          %1417 = vmatpush1.msra.mxu0 0.0
          %1418 = vmatprep.subr.mxu0 0.0
          %1419 = vmatpush1.msra.mxu0 0.0
          %1420 = vmatprep.subr.mxu0 0.0
          %1421 = vmatpush1.msra.mxu0 0.0
          %1422 = vmatprep.subr.mxu0 0.0
          %1423 = vmatpush1.msra.mxu0 0.0
          %1424 = vmatprep.subr.mxu0 0.0
          %1425 = vmatpush1.msra.mxu0 0.0
          %1426 = vmatprep.subr.mxu0 0.0
          %1427 = vmatpush1.msra.mxu0 0.0
          %1428 = vmatprep.subr.mxu0 0.0
          %1429 = vmatpush1.msra.mxu0 0.0
          %1430 = vmatprep.subr.mxu0 0.0
          %1431 = vmatpush1.msra.mxu0 0.0
          %1432 = vmatprep.subr.mxu0 0.0
          %1433 = vmatpush1.msra.mxu0 0.0
          %1434 = vmatprep.subr.mxu0 0.0
          %1435 = vmatpush1.msra.mxu0 0.0
          %1436 = vmatprep.subr.mxu0 0.0
          %1437 = vmatpush1.msra.mxu0 0.0
          %1438 = vmatprep.subr.mxu0 0.0
          %1439 = vmatpush1.msra.mxu0 0.0
          %1440 = vmatprep.subr.mxu0 0.0
          %1441 = vmatpush1.msra.mxu0 0.0
          %1442 = vmatprep.subr.mxu0 0.0
          %1443 = vmatpush1.msra.mxu0 0.0
          %1444 = vmatprep.subr.mxu0 0.0
          %1445 = vmatpush1.msra.mxu0 0.0
          %1446 = vmatprep.subr.mxu0 0.0
          %1447 = vmatpush1.msra.mxu0 0.0
          %1448 = vmatprep.mubr.f32.mxu0 0.0
          %1449 = vmatmul.mubr.f32.gmra.mrb[0].mxu0 %v1367
          %v1450 = vpop.f32.mrb[0].mxu0
          %v1451 = vadd.f32 %v1376, %v1450
          %v1452 = vpop.f32.mrb[0].mxu0
          %1453 = vmatprep.mubr.f32.mxu0 0.0
          %1454 = vmatmul.mubr.f32.gmra.mrb[0].mxu0 %v1368
          %v1455 = vpop.f32.mrb[0].mxu0
          %v1456 = vadd.f32 %v1377, %v1455
          %v1457 = vpop.f32.mrb[0].mxu0
          %1458 = vmatprep.mubr.f32.mxu0 0.0
          %1459 = vmatmul.mubr.f32.gmra.mrb[0].mxu0 %v1369
          %v1460 = vpop.f32.mrb[0].mxu0
          %v1461 = vadd.f32 %v1378, %v1460
          %v1462 = vpop.f32.mrb[0].mxu0
          %1463 = vmatprep.mubr.f32.mxu0 0.0
          %1464 = vmatmul.mubr.f32.gmra.mrb[0].mxu0 %v1370
          %v1465 = vpop.f32.mrb[0].mxu0
          %v1466 = vadd.f32 %v1379, %v1465
          %v1467 = vpop.f32.mrb[0].mxu0
          %1468 = vmatprep.mubr.f32.mxu0 0.0
          %1469 = vmatmul.mubr.f32.gmra.mrb[0].mxu0 %v1371
          %v1470 = vpop.f32.mrb[0].mxu0
          %v1471 = vadd.f32 %v1380, %v1470
          %v1472 = vpop.f32.mrb[0].mxu0
          %1473 = vmatprep.mubr.f32.mxu0 0.0
          %1474 = vmatmul.mubr.f32.gmra.mrb[0].mxu0 %v1372
          %v1475 = vpop.f32.mrb[0].mxu0
          %v1476 = vadd.f32 %v1381, %v1475
          %v1477 = vpop.f32.mrb[0].mxu0
          %1478 = vmatprep.mubr.f32.mxu0 0.0
          %1479 = vmatmul.mubr.f32.gmra.mrb[0].mxu0 %v1373
          %v1480 = vpop.f32.mrb[0].mxu0
          %v1481 = vadd.f32 %v1382, %v1480
          %v1482 = vpop.f32.mrb[0].mxu0
          %1483 = vmatprep.mubr.f32.mxu0 0.0
          %1484 = vmatmul.mubr.f32.gmra.mrb[0].mxu0 %v1374
          %v1485 = vpop.f32.mrb[0].mxu0
          %v1486 = vadd.f32 %v1383, %v1485
          %v1487 = vpop.f32.mrb[0].mxu0
          %1488 = vdwg.mxu0
          %s1489 = scalar_lea.vmem %s4, %s21
          %v1490 = vld [vmem:[%s1489] sm:$0x1]
          %v1492 = vlaneseq
          %v1493 = vshrl.u32 %v1492, 7
          %v1494 = vsub.s32 0, %v1493
          %v1495 = vrot.slane %v1490, %v1494
          %v1497 = vadd.f32 %v1451, %v1495
          %v1498 = vadd.f32 %v1456, %v1495
          %v1499 = vadd.f32 %v1461, %v1495
          %v1500 = vadd.f32 %v1466, %v1495
          %v1501 = vadd.f32 %v1471, %v1495
          %v1502 = vadd.f32 %v1476, %v1495
          %v1503 = vadd.f32 %v1481, %v1495
          %v1504 = vadd.f32 %v1486, %v1495
          %p1505 = scmp.ne.s32.totalorder %s21, 1
          // Predicated region
          $region106: #{arma_forward.1} parent=104 // pred_check
            %p1506 = pneg %p1505
          $region107: #{arma_forward.1} parent=104 // pred_check_branch
            %1508 = sbr.rel (%p1506) target = $region109
          $region108: #{arma_forward.1} parent=104 // pred_region
            %s1509 = smul.u32 %s329, 512
            %s1510 = sadd.s32 %s1348, %s1509
            %s1511 = scalar_lea.vmem [#allocation2], %s1510
            %1512 = vst [vmem:[%s1511] sm:$0xff] %v1497
            %1513 = vst [vmem:[%s1511 + $0x8] sm:$0xff] %v1498
            %1514 = vst [vmem:[%s1511 + $0x10] sm:$0xff] %v1499
            %1515 = vst [vmem:[%s1511 + $0x18] sm:$0xff] %v1500
            %1516 = vst [vmem:[%s1511 + $0x20] sm:$0xff] %v1501
            %1517 = vst [vmem:[%s1511 + $0x28] sm:$0xff] %v1502
            %1518 = vst [vmem:[%s1511 + $0x30] sm:$0xff] %v1503
            %1519 = vst [vmem:[%s1511 + $0x38] sm:$0xff] %v1504
          $region109: #{arma_forward.1} parent=104 // pred_fallthru
            _
          %s1520 = sadd.s32 %s21, 2
          %s1521 = smul.u32 %s1520, 128
          %s1522 = scalar_lea.vmem %s2, %s1521
          %v1523 = vld [vmem:[%s1522] sm:$0xff]
          %v1524 = vld [vmem:[%s1522 + $0x8] sm:$0xff]
          %v1525 = vld [vmem:[%s1522 + $0x10] sm:$0xff]
          %v1526 = vld [vmem:[%s1522 + $0x18] sm:$0xff]
          %v1527 = vld [vmem:[%s1522 + $0x20] sm:$0xff]
          %v1528 = vld [vmem:[%s1522 + $0x28] sm:$0xff]
          %v1529 = vld [vmem:[%s1522 + $0x30] sm:$0xff]
          %v1530 = vld [vmem:[%s1522 + $0x38] sm:$0xff]
          %v1531 = vld [vmem:[%s1522 + $0x40] sm:$0xff]
          %v1532 = vld [vmem:[%s1522 + $0x48] sm:$0xff]
          %v1533 = vld [vmem:[%s1522 + $0x50] sm:$0xff]
          %v1534 = vld [vmem:[%s1522 + $0x58] sm:$0xff]
          %v1535 = vld [vmem:[%s1522 + $0x60] sm:$0xff]
          %v1536 = vld [vmem:[%s1522 + $0x68] sm:$0xff]
          %v1537 = vld [vmem:[%s1522 + $0x70] sm:$0xff]
          %v1538 = vld [vmem:[%s1522 + $0x78] sm:$0xff]
          %s1539 = scalar_lea.vmem [#allocation3], 64
          %v1540 = vld [vmem:[%s1539] sm:$0xff]
          %v1541 = vld [vmem:[%s1539 + $0x8] sm:$0xff]
          %v1542 = vld [vmem:[%s1539 + $0x10] sm:$0xff]
          %v1543 = vld [vmem:[%s1539 + $0x18] sm:$0xff]
          %v1544 = vld [vmem:[%s1539 + $0x20] sm:$0xff]
          %v1545 = vld [vmem:[%s1539 + $0x28] sm:$0xff]
          %v1546 = vld [vmem:[%s1539 + $0x30] sm:$0xff]
          %v1547 = vld [vmem:[%s1539 + $0x38] sm:$0xff]
          %s1548 = sadd.s32 %s1348, 256
          %s1549 = scalar_lea.vmem [#allocation4], %s1548
          %v1550 = vld [vmem:[%s1549] sm:$0xff]
          %v1551 = vld [vmem:[%s1549 + $0x8] sm:$0xff]
          %v1552 = vld [vmem:[%s1549 + $0x10] sm:$0xff]
          %v1553 = vld [vmem:[%s1549 + $0x18] sm:$0xff]
          %v1554 = vld [vmem:[%s1549 + $0x20] sm:$0xff]
          %v1555 = vld [vmem:[%s1549 + $0x28] sm:$0xff]
          %v1556 = vld [vmem:[%s1549 + $0x30] sm:$0xff]
          %v1557 = vld [vmem:[%s1549 + $0x38] sm:$0xff]
          %1558 = vmatprep.subr.mxu0 0.0
          %1559 = vmatpush1.msra.mxu0 %v1523
          %1560 = vmatprep.subr.mxu0 0.0
          %1561 = vmatpush1.msra.mxu0 %v1524
          %1562 = vmatprep.subr.mxu0 0.0
          %1563 = vmatpush1.msra.mxu0 %v1525
          %1564 = vmatprep.subr.mxu0 0.0
          %1565 = vmatpush1.msra.mxu0 %v1526
          %1566 = vmatprep.subr.mxu0 0.0
          %1567 = vmatpush1.msra.mxu0 %v1527
          %1568 = vmatprep.subr.mxu0 0.0
          %1569 = vmatpush1.msra.mxu0 %v1528
          %1570 = vmatprep.subr.mxu0 0.0
          %1571 = vmatpush1.msra.mxu0 %v1529
          %1572 = vmatprep.subr.mxu0 0.0
          %1573 = vmatpush1.msra.mxu0 %v1530
          %1574 = vmatprep.subr.mxu0 0.0
          %1575 = vmatpush1.msra.mxu0 %v1531
          %1576 = vmatprep.subr.mxu0 0.0
          %1577 = vmatpush1.msra.mxu0 %v1532
          %1578 = vmatprep.subr.mxu0 0.0
          %1579 = vmatpush1.msra.mxu0 %v1533
          %1580 = vmatprep.subr.mxu0 0.0
          %1581 = vmatpush1.msra.mxu0 %v1534
          %1582 = vmatprep.subr.mxu0 0.0
          %1583 = vmatpush1.msra.mxu0 %v1535
          %1584 = vmatprep.subr.mxu0 0.0
          %1585 = vmatpush1.msra.mxu0 %v1536
          %1586 = vmatprep.subr.mxu0 0.0
          %1587 = vmatpush1.msra.mxu0 %v1537
          %1588 = vmatprep.subr.mxu0 0.0
          %1589 = vmatpush1.msra.mxu0 %v1538
          %1590 = vmatprep.subr.mxu0 0.0
          %1591 = vmatpush1.msra.mxu0 0.0
          %1592 = vmatprep.subr.mxu0 0.0
          %1593 = vmatpush1.msra.mxu0 0.0
          %1594 = vmatprep.subr.mxu0 0.0
          %1595 = vmatpush1.msra.mxu0 0.0
          %1596 = vmatprep.subr.mxu0 0.0
          %1597 = vmatpush1.msra.mxu0 0.0
          %1598 = vmatprep.subr.mxu0 0.0
          %1599 = vmatpush1.msra.mxu0 0.0
          %1600 = vmatprep.subr.mxu0 0.0
          %1601 = vmatpush1.msra.mxu0 0.0
          %1602 = vmatprep.subr.mxu0 0.0
          %1603 = vmatpush1.msra.mxu0 0.0
          %1604 = vmatprep.subr.mxu0 0.0
          %1605 = vmatpush1.msra.mxu0 0.0
          %1606 = vmatprep.subr.mxu0 0.0
          %1607 = vmatpush1.msra.mxu0 0.0
          %1608 = vmatprep.subr.mxu0 0.0
          %1609 = vmatpush1.msra.mxu0 0.0
          %1610 = vmatprep.subr.mxu0 0.0
          %1611 = vmatpush1.msra.mxu0 0.0
          %1612 = vmatprep.subr.mxu0 0.0
          %1613 = vmatpush1.msra.mxu0 0.0
          %1614 = vmatprep.subr.mxu0 0.0
          %1615 = vmatpush1.msra.mxu0 0.0
          %1616 = vmatprep.subr.mxu0 0.0
          %1617 = vmatpush1.msra.mxu0 0.0
          %1618 = vmatprep.subr.mxu0 0.0
          %1619 = vmatpush1.msra.mxu0 0.0
          %1620 = vmatprep.subr.mxu0 0.0
          %1621 = vmatpush1.msra.mxu0 0.0
          %1622 = vmatprep.mubr.f32.mxu0 0.0
          %1623 = vmatmul.mubr.f32.gmra.mrb[0].mxu0 %v1540
          %v1624 = vpop.f32.mrb[0].mxu0
          %v1625 = vadd.f32 %v1550, %v1624
          %v1626 = vpop.f32.mrb[0].mxu0
          %1627 = vmatprep.mubr.f32.mxu0 0.0
          %1628 = vmatmul.mubr.f32.gmra.mrb[0].mxu0 %v1541
          %v1629 = vpop.f32.mrb[0].mxu0
          %v1630 = vadd.f32 %v1551, %v1629
          %v1631 = vpop.f32.mrb[0].mxu0
          %1632 = vmatprep.mubr.f32.mxu0 0.0
          %1633 = vmatmul.mubr.f32.gmra.mrb[0].mxu0 %v1542
          %v1634 = vpop.f32.mrb[0].mxu0
          %v1635 = vadd.f32 %v1552, %v1634
          %v1636 = vpop.f32.mrb[0].mxu0
          %1637 = vmatprep.mubr.f32.mxu0 0.0
          %1638 = vmatmul.mubr.f32.gmra.mrb[0].mxu0 %v1543
          %v1639 = vpop.f32.mrb[0].mxu0
          %v1640 = vadd.f32 %v1553, %v1639
          %v1641 = vpop.f32.mrb[0].mxu0
          %1642 = vmatprep.mubr.f32.mxu0 0.0
          %1643 = vmatmul.mubr.f32.gmra.mrb[0].mxu0 %v1544
          %v1644 = vpop.f32.mrb[0].mxu0
          %v1645 = vadd.f32 %v1554, %v1644
          %v1646 = vpop.f32.mrb[0].mxu0
          %1647 = vmatprep.mubr.f32.mxu0 0.0
          %1648 = vmatmul.mubr.f32.gmra.mrb[0].mxu0 %v1545
          %v1649 = vpop.f32.mrb[0].mxu0
          %v1650 = vadd.f32 %v1555, %v1649
          %v1651 = vpop.f32.mrb[0].mxu0
          %1652 = vmatprep.mubr.f32.mxu0 0.0
          %1653 = vmatmul.mubr.f32.gmra.mrb[0].mxu0 %v1546
          %v1654 = vpop.f32.mrb[0].mxu0
          %v1655 = vadd.f32 %v1556, %v1654
          %v1656 = vpop.f32.mrb[0].mxu0
          %1657 = vmatprep.mubr.f32.mxu0 0.0
          %1658 = vmatmul.mubr.f32.gmra.mrb[0].mxu0 %v1547
          %v1659 = vpop.f32.mrb[0].mxu0
          %v1660 = vadd.f32 %v1557, %v1659
          %v1661 = vpop.f32.mrb[0].mxu0
          %1662 = vdwg.mxu0
          %s1663 = scalar_lea.vmem %s4, %s1520
          %v1664 = vld [vmem:[%s1663] sm:$0x1]
          %v1666 = vlaneseq
          %v1667 = vshrl.u32 %v1666, 7
          %v1668 = vsub.s32 0, %v1667
          %v1669 = vrot.slane %v1664, %v1668
          %v1671 = vadd.f32 %v1625, %v1669
          %v1672 = vadd.f32 %v1630, %v1669
          %v1673 = vadd.f32 %v1635, %v1669
          %v1674 = vadd.f32 %v1640, %v1669
          %v1675 = vadd.f32 %v1645, %v1669
          %v1676 = vadd.f32 %v1650, %v1669
          %v1677 = vadd.f32 %v1655, %v1669
          %v1678 = vadd.f32 %v1660, %v1669
          %v1679 = vadd.f32 %v1497, %v1671
          %v1680 = vadd.f32 %v1498, %v1672
          %v1681 = vadd.f32 %v1499, %v1673
          %v1682 = vadd.f32 %v1500, %v1674
          %v1683 = vadd.f32 %v1501, %v1675
          %v1684 = vadd.f32 %v1502, %v1676
          %v1685 = vadd.f32 %v1503, %v1677
          %v1686 = vadd.f32 %v1504, %v1678
          // Predicated region
          $region110: #{arma_forward.1} parent=104 // pred_check
            %p1687 = pneg %p1505
          $region111: #{arma_forward.1} parent=104 // pred_check_branch
            %1689 = sbr.rel (%p1687) target = $region113
          $region112: #{arma_forward.1} parent=104 // pred_region
            %s1690 = smul.u32 %s329, 512
            %s1691 = sadd.s32 %s1548, %s1690
            %s1692 = scalar_lea.vmem [#allocation2], %s1691
            %1693 = vst [vmem:[%s1692] sm:$0xff] %v1671
            %1694 = vst [vmem:[%s1692 + $0x8] sm:$0xff] %v1672
            %1695 = vst [vmem:[%s1692 + $0x10] sm:$0xff] %v1673
            %1696 = vst [vmem:[%s1692 + $0x18] sm:$0xff] %v1674
            %1697 = vst [vmem:[%s1692 + $0x20] sm:$0xff] %v1675
            %1698 = vst [vmem:[%s1692 + $0x28] sm:$0xff] %v1676
            %1699 = vst [vmem:[%s1692 + $0x30] sm:$0xff] %v1677
            %1700 = vst [vmem:[%s1692 + $0x38] sm:$0xff] %v1678
          $region113: #{arma_forward.1} parent=104 // pred_fallthru
            _
          %p1701 = scmp.eq.s32.totalorder %s21, 1
          // Predicated region
          $region114: #{arma_forward.1} parent=104 // pred_check
            %p1702 = pneg %p1701
          $region115: #{arma_forward.1} parent=104 // pred_check_branch
            %1704 = sbr.rel (%p1702) target = $region117
          $region116: #{arma_forward.1} parent=104 // pred_region
            %v1705 = vmul.f32 %v1679, 0.5
            %v1706 = vmul.f32 %v1680, 0.5
            %v1707 = vmul.f32 %v1681, 0.5
            %v1708 = vmul.f32 %v1682, 0.5
            %v1709 = vmul.f32 %v1683, 0.5
            %v1710 = vmul.f32 %v1684, 0.5
            %v1711 = vmul.f32 %v1685, 0.5
            %v1712 = vmul.f32 %v1686, 0.5
            %s1713 = scalar_lea.vmem %s5, %s1348
            %1714 = vst [vmem:[%s1713] sm:$0xff] %v1705
            %1715 = vst [vmem:[%s1713 + $0x8] sm:$0xff] %v1706
            %1716 = vst [vmem:[%s1713 + $0x10] sm:$0xff] %v1707
            %1717 = vst [vmem:[%s1713 + $0x18] sm:$0xff] %v1708
            %1718 = vst [vmem:[%s1713 + $0x20] sm:$0xff] %v1709
            %1719 = vst [vmem:[%s1713 + $0x28] sm:$0xff] %v1710
            %1720 = vst [vmem:[%s1713 + $0x30] sm:$0xff] %v1711
            %1721 = vst [vmem:[%s1713 + $0x38] sm:$0xff] %v1712
          $region117: #{arma_forward.1} parent=104 // pred_fallthru
            _
        $region105: #{arma_forward.1} parent=76 // pred_fallthru
          _
        // Predicated region
        $region118: #{arma_forward.1} parent=76 // pred_check
          %p1722 = pneg %p160
        $region119: #{arma_forward.1} parent=76 // pred_check_branch
          %1724 = sbr.rel (%p1722) target = $region121
        $region120: #{arma_forward.1} parent=76 // pred_region
          _
        $region121: #{arma_forward.1} parent=76 // pred_fallthru
          _
        // Predicated region
        $region122: #{arma_forward.1} parent=76 // pred_check
          %p1725 = pneg %p160
        $region123: #{arma_forward.1} parent=76 // pred_check_branch
          %1727 = sbr.rel (%p1725) target = $region125
        $region124: #{arma_forward.1} parent=76 // pred_region
          _
        $region125: #{arma_forward.1} parent=76 // pred_fallthru
          _
      $region77: #{arma_forward.1} parent=5 // pred_fallthru
        _
      %p1728 = scmp.le.s32.totalorder 2, %s11
      // Predicated region
      $region126: #{arma_forward.1} parent=5 // pred_check
        %p1729 = pneg %p1728
      $region127: #{arma_forward.1} parent=5 // pred_check_branch
        %1731 = sbr.rel (%p1729) target = $region129
      $region128: #{arma_forward.1} parent=5 // pred_region
        %s1732 = ssub.s32 %s11, 2
      $region129: #{arma_forward.1} parent=5 // pred_fallthru
        _
    $region6: #{arma_forward.1} parent=1 // loop_footer
      %s15 = sadd.s32 1, %s11
    $region7: #{arma_forward.1} parent=1 // loop_footer_branch
      %10 = sbr.rel target = $region3
    $region8: #{arma_forward.1} parent=1 // loop_exit
      _

</llo_original>
